<compile_context>
chip_gen: v6e
topology: v6e:2x2x1
jax: 0.10.0
libtpu: 0.0.40
codegen_flags: <defaults>
</compile_context>

<pallas_src>
import functools

import jax
import jax.numpy as jnp
from jax.experimental import pallas as pl
from jax.experimental.pallas import tpu as pltpu


LANE = 128
SUBLANE = 8


def _round_up(n, m):
    return ((n + m - 1) // m) * m


def _pad_to(a, shape):
    """Zero-pad trailing edges of `a` up to `shape` (init-time, weights only)."""
    pads = [(0, s - d) for d, s in zip(a.shape, shape)]
    return jnp.pad(a, pads)


# ----------------------------------------------------------------------------
# Fused whole-trunk kernel (all TemporalBlocks + consensus + Linear head)
# ----------------------------------------------------------------------------
def _make_tcn_kernel(block_meta, *, k, Bt, Tp):
    """block_meta: list of dicts with 'd', 'cin_p', 'cout_p', 'has_down' (static)."""

    def causal_conv(x, w_ref, b_ref, d, cin_p):
        """Dilated causal conv as k accumulated matmuls (no im2col buffer).

        PyTorch tap j (weight[:, :, j]) reads the input (k-1-j)*d steps in the
        past.  Every sample has >= (k-1)*d zeroed pad rows in front of its data,
        so a plain down-shift of the whole (N, C) slab is exact for every row we
        keep (pad-region outputs are masked right after the conv).
        """
        n = x.shape[0]
        acc = jnp.dot(x, w_ref[pl.ds((k - 1) * cin_p, cin_p), :],
                      preferred_element_type=jnp.float32)
        for j in range(k - 1):
            o = (k - 1 - j) * d
            xs = jnp.concatenate(
                [jnp.zeros((o, cin_p), x.dtype), x[:n - o, :]], axis=0)
            acc = acc + jnp.dot(xs, w_ref[pl.ds(j * cin_p, cin_p), :],
                                preferred_element_type=jnp.float32)
        return acc + b_ref[...]

    def kernel(*refs):
        it = iter(refs)
        x_ref = next(it)
        wmask_ref = next(it)
        valid_ref = next(it)
        block_refs = []
        for meta in block_meta:
            n_args = 6 if meta['has_down'] else 4
            block_refs.append([next(it) for _ in range(n_args)])
        wo_ref = next(it)
        bo_ref = next(it)
        o_ref = next(it)

        valid = valid_ref[...]        # (N, 1) f32: 1 on data rows, 0 on pad/tail rows
        a = x_ref[...]                # (N, cin_p) bf16, pad/tail rows already zero

        out_f32 = None
        for meta, brefs in zip(block_meta, block_refs):
            d, cin_p, cout_p = meta['d'], meta['cin_p'], meta['cout_p']
            w1_ref, b1_ref, w2_ref, b2_ref = brefs[:4]

            # conv1 + ReLU; then zero the pad/tail rows so conv2's causal left
            # context is exact zeros (PyTorch pad + Chomp1d semantics).
            h1 = jnp.maximum(causal_conv(a, w1_ref, b1_ref, d, cin_p), 0.0)
            h1 = (h1 * valid).astype(jnp.bfloat16)

            # conv2 + ReLU
            h2 = jnp.maximum(causal_conv(h1, w2_ref, b2_ref, d, cout_p), 0.0)

            # residual branch (identity or 1x1 conv), straight from `a` (no re-slice)
            if meta['has_down']:
                wd_ref, bd_ref = brefs[4], brefs[5]
                res = jnp.dot(a, wd_ref[...],
                              preferred_element_type=jnp.float32) + bd_ref[...]
            else:
                res = a.astype(jnp.float32)

            out_f32 = jnp.maximum(h2 + res, 0.0) * valid      # (N, cout_p) f32
            a = out_f32.astype(jnp.bfloat16)

        # Consensus (masked temporal mean) + Linear head, fused: the final
        # activation never leaves VMEM.  wmask already carries the exact
        # per-sample 1/length weights (computed on the host in f32).
        weighted = out_f32 * wmask_ref[...]                   # (N, C_last) f32
        rows = []
        for s in range(Bt):                                   # per-sample time sum
            rows.append(jnp.sum(weighted[s * Tp:(s + 1) * Tp, :],
                                axis=0, keepdims=True))       # (1, C_last)
        avg = jnp.concatenate(rows, axis=0) if Bt > 1 else rows[0]   # (Bt, C_last)
        logits = jnp.dot(avg.astype(jnp.bfloat16), wo_ref[...],
                         preferred_element_type=jnp.float32) + bo_ref[...]
        o_ref[0] = logits                                     # (Bt, nc_p) f32

    return kernel


# ----------------------------------------------------------------------------
# Parameter init (deterministic, synthetic) + padding / tap-matrix folding
# ----------------------------------------------------------------------------
def init_params(key, input_size, num_channels, num_classes, kernel_size):
    """Raw fp32 parameters; conv weights in (k, cin, cout) layout
    (== torch Conv1d weight[:, :, j].T for tap j, weight_norm already folded)."""
    raw = {'blocks': []}
    cin = input_size
    scale = 0.05
    for cout in num_channels:
        key, k1, k2, k3, k4, k5, k6 = jax.random.split(key, 7)
        blk = {
            'w1': scale * jax.random.normal(k1, (kernel_size, cin, cout), jnp.float32),
            'b1': scale * jax.random.normal(k2, (cout,), jnp.float32),
            'w2': scale * jax.random.normal(k3, (kernel_size, cout, cout), jnp.float32),
            'b2': scale * jax.random.normal(k4, (cout,), jnp.float32),
        }
        if cin != cout:  # 1x1 downsample conv for the residual branch
            blk['wd'] = scale * jax.random.normal(k5, (1, cin, cout), jnp.float32)
            blk['bd'] = scale * jax.random.normal(k6, (cout,), jnp.float32)
        else:
            blk['wd'] = None
            blk['bd'] = None
        raw['blocks'].append(blk)
        cin = cout
    key, k7, k8 = jax.random.split(key, 3)
    raw['w_out'] = scale * jax.random.normal(k7, (cin, num_classes), jnp.float32)
    raw['b_out'] = scale * jax.random.normal(k8, (num_classes,), jnp.float32)
    return raw


def prepare_params(raw, input_size, num_channels, num_classes, kernel_size):
    """Zero-pad channels to multiples of 128 and stack taps as (k*Cin_pad, Cout_pad).

    Padded channels are exactly zero (weights and biases) so the real-channel math
    is unchanged; weights are bf16 (fp32 accumulation on the MXU), biases stay f32.
    """
    k = kernel_size
    params = {'blocks': [], 'num_classes': num_classes, 'k': k}
    cin_p = _round_up(input_size, LANE)
    params['cin_pad'] = cin_p
    for r in raw['blocks']:
        cout = r['b1'].shape[0]
        cout_p = _round_up(cout, LANE)
        blk = {
            'w1': _pad_to(r['w1'], (k, cin_p, cout_p)).reshape(k * cin_p, cout_p)
                  .astype(jnp.bfloat16),
            'b1': _pad_to(r['b1'].reshape(1, -1), (1, cout_p)).astype(jnp.float32),
            'w2': _pad_to(r['w2'], (k, cout_p, cout_p)).reshape(k * cout_p, cout_p)
                  .astype(jnp.bfloat16),
            'b2': _pad_to(r['b2'].reshape(1, -1), (1, cout_p)).astype(jnp.float32),
            'wd': None,
            'bd': None,
        }
        if r['wd'] is not None:
            blk['wd'] = _pad_to(r['wd'][0], (cin_p, cout_p)).astype(jnp.bfloat16)
            blk['bd'] = _pad_to(r['bd'].reshape(1, -1), (1, cout_p)).astype(jnp.float32)
        params['blocks'].append(blk)
        cin_p = cout_p
    nc_p = _round_up(num_classes, LANE)
    params['w_out'] = _pad_to(raw['w_out'], (cin_p, nc_p)).astype(jnp.bfloat16)
    params['b_out'] = _pad_to(raw['b_out'].reshape(1, -1), (1, nc_p)).astype(jnp.float32)
    return params


# ----------------------------------------------------------------------------
# Full forward pass (one pallas_call)
# ----------------------------------------------------------------------------
def tcn_forward(params, x, lengths):
    """x: (B, T, input_size) f32; lengths: (B,) int. Returns (B, num_classes) f32."""
    B, T, cin = x.shape
    blocks = params['blocks']
    k = params['k']
    cin_p = params['cin_pad']
    nc_p = params['b_out'].shape[1]
    n_blocks = len(blocks)

    # Per-sample layout: [H zero pad rows | T data rows | alignment tail], H covers
    # the deepest causal halo of any layer so one pad region serves every conv.
    H = max((k - 1) * (2 ** i) for i in range(n_blocks))
    Tp = _round_up(H + T, SUBLANE)

    cout_ps = [blk['b1'].shape[1] for blk in blocks]
    cmax = max([cin_p] + cout_ps)

    # Batch folding: target M = Bt*Tp >= 256 matmul rows per step, cap by a rough
    # VMEM working-set budget, and keep >= 2 grid steps when B allows so both
    # v7x TensorCores get work.
    Bt = max(1, min(B, (256 + Tp - 1) // Tp))
    max_rows = max(Tp, (40 * 2 ** 20) // (12 * 4 * cmax))
    Bt = max(1, min(Bt, max_rows // Tp))
    if B >= 2 and B // Bt < 2:
        Bt = max(1, B // 2)
    G = (B + Bt - 1) // Bt
    B_pad = G * Bt
    N = Bt * Tp

    # Pack x channels-last (transpose(1, 2) absorbed) into the padded row layout.
    xb = jnp.zeros((B_pad, Tp, cin_p), jnp.bfloat16)
    xb = xb.at[:B, H:H + T, :cin].set(x.astype(jnp.bfloat16))
    x_flat = xb.reshape(B_pad * Tp, cin_p)

    # Consensus weights: exact 1/length inside [H, H+length), 0 elsewhere
    # (also zeroes padded batch rows; length==0 is guarded).
    lengths = jnp.clip(lengths.astype(jnp.int32), 0, T)
    lengths = jnp.concatenate([lengths, jnp.zeros((B_pad - B,), jnp.int32)])
    t_idx = jnp.arange(Tp)[None, :]
    in_len = (t_idx >= H) & (t_idx < H + lengths[:, None])
    inv_len = 1.0 / jnp.maximum(lengths, 1).astype(jnp.float32)
    wmask = (in_len.astype(jnp.float32) * inv_len[:, None]).reshape(B_pad * Tp, 1)

    # Static data-region mask (same for every grid step): 1 on data rows.
    tv = jnp.arange(Tp)
    valid = ((tv >= H) & (tv < H + T)).astype(jnp.float32)
    valid = jnp.tile(valid, (Bt,)).reshape(N, 1)

    def const_spec(shape):
        zeros = (0,) * len(shape)
        # Constant across the grid -> single-buffer to halve its VMEM footprint.
        return pl.BlockSpec(shape, lambda g: zeros, pipeline_mode=pl.Buffered(1))

    block_meta = []
    in_arrays = [x_flat, wmask, valid]
    in_specs = [
        pl.BlockSpec((N, cin_p), lambda g: (g, 0)),
        pl.BlockSpec((N, 1), lambda g: (g, 0)),
        const_spec((N, 1)),
    ]
    cprev = cin_p
    for i, blk in enumerate(blocks):
        cout_p = blk['b1'].shape[1]
        meta = dict(d=2 ** i, cin_p=cprev, cout_p=cout_p,
                    has_down=blk['wd'] is not None)
        block_meta.append(meta)
        arrs = [blk['w1'], blk['b1'], blk['w2'], blk['b2']]
        if meta['has_down']:
            arrs += [blk['wd'], blk['bd']]
        for a_ in arrs:
            in_arrays.append(a_)
            in_specs.append(const_spec(a_.shape))
        cprev = cout_p
    in_arrays += [params['w_out'], params['b_out']]
    in_specs += [const_spec(params['w_out'].shape), const_spec(params['b_out'].shape)]

    kernel = _make_tcn_kernel(block_meta, k=k, Bt=Bt, Tp=Tp)

    out_shape = jax.ShapeDtypeStruct((G, Bt, nc_p), jnp.float32)
    out_spec = pl.BlockSpec((1, Bt, nc_p), lambda g: (g, 0, 0))

    # VMEM budget: single-buffered weights (x2 slack) + a handful of (N, cmax)
    # f32 working slabs + the double-buffered activation/mask blocks.  Clamped
    # to [32, 100] MiB (stays within v7x's 64 MiB whenever the working set does).
    weight_bytes = sum(int(a.size) * a.dtype.itemsize for a in in_arrays[3:])
    need = 2 * weight_bytes + 4 * N * cin_p * 2 + 12 * N * cmax * 4
    vmem_limit = int(min(100 * 2 ** 20, max(32 * 2 ** 20, need)))

    logits = pl.pallas_call(
        kernel,
        out_shape=out_shape,
        grid=(G,),
        in_specs=in_specs,
        out_specs=out_spec,
        compiler_params=pltpu.CompilerParams(
            dimension_semantics=("parallel",),      # megacore sharding on v7x
            vmem_limit_bytes=vmem_limit,
        ),
    )(*in_arrays)

    return logits.reshape(B_pad, nc_p)[:B, :params['num_classes']]


if __name__ == "__main__":
    # Small shapes consistent with the module's forward:
    #   x: (B, T, input_size), lengths: (B,), output: (B, num_classes)
    B, T = 2, 16
    input_size = 16
    num_channels = [32, 32]     # two TemporalBlocks, dilations 1 and 2
    num_classes = 10
    kernel_size = 3

    key = jax.random.PRNGKey(0)
    kx, kp = jax.random.split(key)
    x = jax.random.normal(kx, (B, T, input_size), jnp.float32)
    lengths = jnp.array([T, 11], dtype=jnp.int32)

    raw = init_params(kp, input_size, num_channels, num_classes, kernel_size)
    params = prepare_params(raw, input_size, num_channels, num_classes, kernel_size)

    fwd = jax.jit(functools.partial(tcn_forward, params))
    logits = fwd(x, lengths)
    jax.block_until_ready(logits)

    assert logits.shape == (B, num_classes)
    assert bool(jnp.all(jnp.isfinite(logits)))
    print("KERNEL_OK")
</pallas_src>

<mosaic_0001>
module attributes {stable_mosaic.version = 11 : i64} {
  func.func @kernel(%arg0: i32, %arg1: memref<24x128xbf16, #tpu.memory_space<vmem>>, %arg2: memref<24x1xf32, #tpu.memory_space<vmem>>, %arg3: memref<24x1xf32, #tpu.memory_space<vmem>>, %arg4: memref<384x128xbf16, #tpu.memory_space<vmem>>, %arg5: memref<1x128xf32, #tpu.memory_space<vmem>>, %arg6: memref<384x128xbf16, #tpu.memory_space<vmem>>, %arg7: memref<1x128xf32, #tpu.memory_space<vmem>>, %arg8: memref<128x128xbf16, #tpu.memory_space<vmem>>, %arg9: memref<1x128xf32, #tpu.memory_space<vmem>>, %arg10: memref<384x128xbf16, #tpu.memory_space<vmem>>, %arg11: memref<1x128xf32, #tpu.memory_space<vmem>>, %arg12: memref<384x128xbf16, #tpu.memory_space<vmem>>, %arg13: memref<1x128xf32, #tpu.memory_space<vmem>>, %arg14: memref<128x128xbf16, #tpu.memory_space<vmem>>, %arg15: memref<1x128xf32, #tpu.memory_space<vmem>>, %arg16: memref<1x1x128xf32, #tpu.memory_space<vmem>>) attributes {dimension_semantics = [#tpu.dimension_semantics<parallel>], iteration_bounds = array<i64: 2>, scalar_prefetch = 0 : i64, scratch_operands = 0 : i64, tpu.core_type = #tpu.core_type<tc>, window_params = [{transform_indices = @transform_0, window_bounds = array<i64: 24, 128>}, {transform_indices = @transform_1, window_bounds = array<i64: 24, 1>}, {pipeline_mode = #tpu.pipeline_mode<synchronous>, transform_indices = @transform_2, window_bounds = array<i64: 24, 1>}, {pipeline_mode = #tpu.pipeline_mode<synchronous>, transform_indices = @transform_3, window_bounds = array<i64: 384, 128>}, {pipeline_mode = #tpu.pipeline_mode<synchronous>, transform_indices = @transform_4, window_bounds = array<i64: 1, 128>}, {pipeline_mode = #tpu.pipeline_mode<synchronous>, transform_indices = @transform_5, window_bounds = array<i64: 384, 128>}, {pipeline_mode = #tpu.pipeline_mode<synchronous>, transform_indices = @transform_6, window_bounds = array<i64: 1, 128>}, {pipeline_mode = #tpu.pipeline_mode<synchronous>, transform_indices = @transform_7, window_bounds = array<i64: 128, 128>}, {pipeline_mode = #tpu.pipeline_mode<synchronous>, transform_indices = @transform_8, window_bounds = array<i64: 1, 128>}, {pipeline_mode = #tpu.pipeline_mode<synchronous>, transform_indices = @transform_9, window_bounds = array<i64: 384, 128>}, {pipeline_mode = #tpu.pipeline_mode<synchronous>, transform_indices = @transform_10, window_bounds = array<i64: 1, 128>}, {pipeline_mode = #tpu.pipeline_mode<synchronous>, transform_indices = @transform_11, window_bounds = array<i64: 384, 128>}, {pipeline_mode = #tpu.pipeline_mode<synchronous>, transform_indices = @transform_12, window_bounds = array<i64: 1, 128>}, {pipeline_mode = #tpu.pipeline_mode<synchronous>, transform_indices = @transform_13, window_bounds = array<i64: 128, 128>}, {pipeline_mode = #tpu.pipeline_mode<synchronous>, transform_indices = @transform_14, window_bounds = array<i64: 1, 128>}, {transform_indices = @transform_15, window_bounds = array<i64: 1, 1, 128>}]} {
    %c0 = arith.constant 0 : index
    %c0_0 = arith.constant 0 : index
    %0 = vector.load %arg3[%c0, %c0_0] : memref<24x1xf32, #tpu.memory_space<vmem>>, vector<24x1xf32>
    %c0_1 = arith.constant 0 : index
    %c0_2 = arith.constant 0 : index
    %1 = vector.load %arg1[%c0_1, %c0_2] : memref<24x128xbf16, #tpu.memory_space<vmem>>, vector<24x128xbf16>
    %c256 = arith.constant 256 : index
    %c0_3 = arith.constant 0 : index
    %2 = vector.load %arg4[%c256, %c0_3] : memref<384x128xbf16, #tpu.memory_space<vmem>>, vector<128x128xbf16>
    %cst = arith.constant dense<0.000000e+00> : vector<24x128xf32>
    %3 = tpu.matmul %1, %2, %cst {dimension_numbers = #tpu.dot_dimension_numbers<[1], [0], [0], [1], [0, 0, 1, 1], [], []>} : vector<24x128xbf16>, vector<128x128xbf16>, vector<24x128xf32> -> vector<24x128xf32>
    %cst_4 = arith.constant 0.000000e+00 : bf16
    %4 = vector.broadcast %cst_4 : bf16 to vector<2x128xbf16>
    %5 = vector.extract_strided_slice %1 {offsets = [0, 0], sizes = [22, 128], strides = [1, 1]} : vector<24x128xbf16> to vector<22x128xbf16>
    %6 = tpu.concatenate %4, %5 in 0 : vector<2x128xbf16>, vector<22x128xbf16> -> vector<24x128xbf16>
    %c0_5 = arith.constant 0 : index
    %c0_6 = arith.constant 0 : index
    %7 = vector.load %arg4[%c0_5, %c0_6] : memref<384x128xbf16, #tpu.memory_space<vmem>>, vector<128x128xbf16>
    %cst_7 = arith.constant dense<0.000000e+00> : vector<24x128xf32>
    %8 = tpu.matmul %6, %7, %cst_7 {dimension_numbers = #tpu.dot_dimension_numbers<[1], [0], [0], [1], [0, 0, 1, 1], [], []>} : vector<24x128xbf16>, vector<128x128xbf16>, vector<24x128xf32> -> vector<24x128xf32>
    %9 = arith.addf %3, %8 : vector<24x128xf32>
    %cst_8 = arith.constant 0.000000e+00 : bf16
    %10 = vector.broadcast %cst_8 : bf16 to vector<1x128xbf16>
    %11 = vector.extract_strided_slice %1 {offsets = [0, 0], sizes = [23, 128], strides = [1, 1]} : vector<24x128xbf16> to vector<23x128xbf16>
    %12 = tpu.concatenate %10, %11 in 0 : vector<1x128xbf16>, vector<23x128xbf16> -> vector<24x128xbf16>
    %c128 = arith.constant 128 : index
    %c0_9 = arith.constant 0 : index
    %13 = vector.load %arg4[%c128, %c0_9] : memref<384x128xbf16, #tpu.memory_space<vmem>>, vector<128x128xbf16>
    %cst_10 = arith.constant dense<0.000000e+00> : vector<24x128xf32>
    %14 = tpu.matmul %12, %13, %cst_10 {dimension_numbers = #tpu.dot_dimension_numbers<[1], [0], [0], [1], [0, 0, 1, 1], [], []>} : vector<24x128xbf16>, vector<128x128xbf16>, vector<24x128xf32> -> vector<24x128xf32>
    %15 = arith.addf %9, %14 : vector<24x128xf32>
    %c0_11 = arith.constant 0 : index
    %c0_12 = arith.constant 0 : index
    %16 = vector.load %arg5[%c0_11, %c0_12] : memref<1x128xf32, #tpu.memory_space<vmem>>, vector<1x128xf32>
    %17 = vector.broadcast %16 : vector<1x128xf32> to vector<24x128xf32>
    %18 = arith.addf %15, %17 : vector<24x128xf32>
    %cst_13 = arith.constant 0.000000e+00 : f32
    %19 = vector.broadcast %cst_13 : f32 to vector<24x128xf32>
    %20 = arith.maximumf %18, %19 : vector<24x128xf32>
    %21 = vector.broadcast %0 : vector<24x1xf32> to vector<24x128xf32>
    %22 = arith.mulf %20, %21 : vector<24x128xf32>
    %23 = arith.truncf %22 : vector<24x128xf32> to vector<24x128xbf16>
    %c256_14 = arith.constant 256 : index
    %c0_15 = arith.constant 0 : index
    %24 = vector.load %arg6[%c256_14, %c0_15] : memref<384x128xbf16, #tpu.memory_space<vmem>>, vector<128x128xbf16>
    %cst_16 = arith.constant dense<0.000000e+00> : vector<24x128xf32>
    %25 = tpu.matmul %23, %24, %cst_16 {dimension_numbers = #tpu.dot_dimension_numbers<[1], [0], [0], [1], [0, 0, 1, 1], [], []>} : vector<24x128xbf16>, vector<128x128xbf16>, vector<24x128xf32> -> vector<24x128xf32>
    %cst_17 = arith.constant 0.000000e+00 : bf16
    %26 = vector.broadcast %cst_17 : bf16 to vector<2x128xbf16>
    %27 = vector.extract_strided_slice %23 {offsets = [0, 0], sizes = [22, 128], strides = [1, 1]} : vector<24x128xbf16> to vector<22x128xbf16>
    %28 = tpu.concatenate %26, %27 in 0 : vector<2x128xbf16>, vector<22x128xbf16> -> vector<24x128xbf16>
    %c0_18 = arith.constant 0 : index
    %c0_19 = arith.constant 0 : index
    %29 = vector.load %arg6[%c0_18, %c0_19] : memref<384x128xbf16, #tpu.memory_space<vmem>>, vector<128x128xbf16>
    %cst_20 = arith.constant dense<0.000000e+00> : vector<24x128xf32>
    %30 = tpu.matmul %28, %29, %cst_20 {dimension_numbers = #tpu.dot_dimension_numbers<[1], [0], [0], [1], [0, 0, 1, 1], [], []>} : vector<24x128xbf16>, vector<128x128xbf16>, vector<24x128xf32> -> vector<24x128xf32>
    %31 = arith.addf %25, %30 : vector<24x128xf32>
    %cst_21 = arith.constant 0.000000e+00 : bf16
    %32 = vector.broadcast %cst_21 : bf16 to vector<1x128xbf16>
    %33 = vector.extract_strided_slice %23 {offsets = [0, 0], sizes = [23, 128], strides = [1, 1]} : vector<24x128xbf16> to vector<23x128xbf16>
    %34 = tpu.concatenate %32, %33 in 0 : vector<1x128xbf16>, vector<23x128xbf16> -> vector<24x128xbf16>
    %c128_22 = arith.constant 128 : index
    %c0_23 = arith.constant 0 : index
    %35 = vector.load %arg6[%c128_22, %c0_23] : memref<384x128xbf16, #tpu.memory_space<vmem>>, vector<128x128xbf16>
    %cst_24 = arith.constant dense<0.000000e+00> : vector<24x128xf32>
    %36 = tpu.matmul %34, %35, %cst_24 {dimension_numbers = #tpu.dot_dimension_numbers<[1], [0], [0], [1], [0, 0, 1, 1], [], []>} : vector<24x128xbf16>, vector<128x128xbf16>, vector<24x128xf32> -> vector<24x128xf32>
    %37 = arith.addf %31, %36 : vector<24x128xf32>
    %c0_25 = arith.constant 0 : index
    %c0_26 = arith.constant 0 : index
    %38 = vector.load %arg7[%c0_25, %c0_26] : memref<1x128xf32, #tpu.memory_space<vmem>>, vector<1x128xf32>
    %39 = vector.broadcast %38 : vector<1x128xf32> to vector<24x128xf32>
    %40 = arith.addf %37, %39 : vector<24x128xf32>
    %cst_27 = arith.constant 0.000000e+00 : f32
    %41 = vector.broadcast %cst_27 : f32 to vector<24x128xf32>
    %42 = arith.maximumf %40, %41 : vector<24x128xf32>
    %c0_28 = arith.constant 0 : index
    %c0_29 = arith.constant 0 : index
    %43 = vector.load %arg8[%c0_28, %c0_29] : memref<128x128xbf16, #tpu.memory_space<vmem>>, vector<128x128xbf16>
    %cst_30 = arith.constant dense<0.000000e+00> : vector<24x128xf32>
    %44 = tpu.matmul %1, %43, %cst_30 {dimension_numbers = #tpu.dot_dimension_numbers<[1], [0], [0], [1], [0, 0, 1, 1], [], []>} : vector<24x128xbf16>, vector<128x128xbf16>, vector<24x128xf32> -> vector<24x128xf32>
    %c0_31 = arith.constant 0 : index
    %c0_32 = arith.constant 0 : index
    %45 = vector.load %arg9[%c0_31, %c0_32] : memref<1x128xf32, #tpu.memory_space<vmem>>, vector<1x128xf32>
    %46 = vector.broadcast %45 : vector<1x128xf32> to vector<24x128xf32>
    %47 = arith.addf %44, %46 : vector<24x128xf32>
    %48 = arith.addf %42, %47 : vector<24x128xf32>
    %cst_33 = arith.constant 0.000000e+00 : f32
    %49 = vector.broadcast %cst_33 : f32 to vector<24x128xf32>
    %50 = arith.maximumf %48, %49 : vector<24x128xf32>
    %51 = vector.broadcast %0 : vector<24x1xf32> to vector<24x128xf32>
    %52 = arith.mulf %50, %51 : vector<24x128xf32>
    %53 = arith.truncf %52 : vector<24x128xf32> to vector<24x128xbf16>
    %c256_34 = arith.constant 256 : index
    %c0_35 = arith.constant 0 : index
    %54 = vector.load %arg10[%c256_34, %c0_35] : memref<384x128xbf16, #tpu.memory_space<vmem>>, vector<128x128xbf16>
    %cst_36 = arith.constant dense<0.000000e+00> : vector<24x128xf32>
    %55 = tpu.matmul %53, %54, %cst_36 {dimension_numbers = #tpu.dot_dimension_numbers<[1], [0], [0], [1], [0, 0, 1, 1], [], []>} : vector<24x128xbf16>, vector<128x128xbf16>, vector<24x128xf32> -> vector<24x128xf32>
    %cst_37 = arith.constant 0.000000e+00 : bf16
    %56 = vector.broadcast %cst_37 : bf16 to vector<4x128xbf16>
    %57 = vector.extract_strided_slice %53 {offsets = [0, 0], sizes = [20, 128], strides = [1, 1]} : vector<24x128xbf16> to vector<20x128xbf16>
    %58 = tpu.concatenate %56, %57 in 0 : vector<4x128xbf16>, vector<20x128xbf16> -> vector<24x128xbf16>
    %c0_38 = arith.constant 0 : index
    %c0_39 = arith.constant 0 : index
    %59 = vector.load %arg10[%c0_38, %c0_39] : memref<384x128xbf16, #tpu.memory_space<vmem>>, vector<128x128xbf16>
    %cst_40 = arith.constant dense<0.000000e+00> : vector<24x128xf32>
    %60 = tpu.matmul %58, %59, %cst_40 {dimension_numbers = #tpu.dot_dimension_numbers<[1], [0], [0], [1], [0, 0, 1, 1], [], []>} : vector<24x128xbf16>, vector<128x128xbf16>, vector<24x128xf32> -> vector<24x128xf32>
    %61 = arith.addf %55, %60 : vector<24x128xf32>
    %cst_41 = arith.constant 0.000000e+00 : bf16
    %62 = vector.broadcast %cst_41 : bf16 to vector<2x128xbf16>
    %63 = vector.extract_strided_slice %53 {offsets = [0, 0], sizes = [22, 128], strides = [1, 1]} : vector<24x128xbf16> to vector<22x128xbf16>
    %64 = tpu.concatenate %62, %63 in 0 : vector<2x128xbf16>, vector<22x128xbf16> -> vector<24x128xbf16>
    %c128_42 = arith.constant 128 : index
    %c0_43 = arith.constant 0 : index
    %65 = vector.load %arg10[%c128_42, %c0_43] : memref<384x128xbf16, #tpu.memory_space<vmem>>, vector<128x128xbf16>
    %cst_44 = arith.constant dense<0.000000e+00> : vector<24x128xf32>
    %66 = tpu.matmul %64, %65, %cst_44 {dimension_numbers = #tpu.dot_dimension_numbers<[1], [0], [0], [1], [0, 0, 1, 1], [], []>} : vector<24x128xbf16>, vector<128x128xbf16>, vector<24x128xf32> -> vector<24x128xf32>
    %67 = arith.addf %61, %66 : vector<24x128xf32>
    %c0_45 = arith.constant 0 : index
    %c0_46 = arith.constant 0 : index
    %68 = vector.load %arg11[%c0_45, %c0_46] : memref<1x128xf32, #tpu.memory_space<vmem>>, vector<1x128xf32>
    %69 = vector.broadcast %68 : vector<1x128xf32> to vector<24x128xf32>
    %70 = arith.addf %67, %69 : vector<24x128xf32>
    %cst_47 = arith.constant 0.000000e+00 : f32
    %71 = vector.broadcast %cst_47 : f32 to vector<24x128xf32>
    %72 = arith.maximumf %70, %71 : vector<24x128xf32>
    %73 = vector.broadcast %0 : vector<24x1xf32> to vector<24x128xf32>
    %74 = arith.mulf %72, %73 : vector<24x128xf32>
    %75 = arith.truncf %74 : vector<24x128xf32> to vector<24x128xbf16>
    %c256_48 = arith.constant 256 : index
    %c0_49 = arith.constant 0 : index
    %76 = vector.load %arg12[%c256_48, %c0_49] : memref<384x128xbf16, #tpu.memory_space<vmem>>, vector<128x128xbf16>
    %cst_50 = arith.constant dense<0.000000e+00> : vector<24x128xf32>
    %77 = tpu.matmul %75, %76, %cst_50 {dimension_numbers = #tpu.dot_dimension_numbers<[1], [0], [0], [1], [0, 0, 1, 1], [], []>} : vector<24x128xbf16>, vector<128x128xbf16>, vector<24x128xf32> -> vector<24x128xf32>
    %cst_51 = arith.constant 0.000000e+00 : bf16
    %78 = vector.broadcast %cst_51 : bf16 to vector<4x128xbf16>
    %79 = vector.extract_strided_slice %75 {offsets = [0, 0], sizes = [20, 128], strides = [1, 1]} : vector<24x128xbf16> to vector<20x128xbf16>
    %80 = tpu.concatenate %78, %79 in 0 : vector<4x128xbf16>, vector<20x128xbf16> -> vector<24x128xbf16>
    %c0_52 = arith.constant 0 : index
    %c0_53 = arith.constant 0 : index
    %81 = vector.load %arg12[%c0_52, %c0_53] : memref<384x128xbf16, #tpu.memory_space<vmem>>, vector<128x128xbf16>
    %cst_54 = arith.constant dense<0.000000e+00> : vector<24x128xf32>
    %82 = tpu.matmul %80, %81, %cst_54 {dimension_numbers = #tpu.dot_dimension_numbers<[1], [0], [0], [1], [0, 0, 1, 1], [], []>} : vector<24x128xbf16>, vector<128x128xbf16>, vector<24x128xf32> -> vector<24x128xf32>
    %83 = arith.addf %77, %82 : vector<24x128xf32>
    %cst_55 = arith.constant 0.000000e+00 : bf16
    %84 = vector.broadcast %cst_55 : bf16 to vector<2x128xbf16>
    %85 = vector.extract_strided_slice %75 {offsets = [0, 0], sizes = [22, 128], strides = [1, 1]} : vector<24x128xbf16> to vector<22x128xbf16>
    %86 = tpu.concatenate %84, %85 in 0 : vector<2x128xbf16>, vector<22x128xbf16> -> vector<24x128xbf16>
    %c128_56 = arith.constant 128 : index
    %c0_57 = arith.constant 0 : index
    %87 = vector.load %arg12[%c128_56, %c0_57] : memref<384x128xbf16, #tpu.memory_space<vmem>>, vector<128x128xbf16>
    %cst_58 = arith.constant dense<0.000000e+00> : vector<24x128xf32>
    %88 = tpu.matmul %86, %87, %cst_58 {dimension_numbers = #tpu.dot_dimension_numbers<[1], [0], [0], [1], [0, 0, 1, 1], [], []>} : vector<24x128xbf16>, vector<128x128xbf16>, vector<24x128xf32> -> vector<24x128xf32>
    %89 = arith.addf %83, %88 : vector<24x128xf32>
    %c0_59 = arith.constant 0 : index
    %c0_60 = arith.constant 0 : index
    %90 = vector.load %arg13[%c0_59, %c0_60] : memref<1x128xf32, #tpu.memory_space<vmem>>, vector<1x128xf32>
    %91 = vector.broadcast %90 : vector<1x128xf32> to vector<24x128xf32>
    %92 = arith.addf %89, %91 : vector<24x128xf32>
    %cst_61 = arith.constant 0.000000e+00 : f32
    %93 = vector.broadcast %cst_61 : f32 to vector<24x128xf32>
    %94 = arith.maximumf %92, %93 : vector<24x128xf32>
    %95 = arith.extf %53 : vector<24x128xbf16> to vector<24x128xf32>
    %96 = arith.addf %94, %95 : vector<24x128xf32>
    %cst_62 = arith.constant 0.000000e+00 : f32
    %97 = vector.broadcast %cst_62 : f32 to vector<24x128xf32>
    %98 = arith.maximumf %96, %97 : vector<24x128xf32>
    %99 = vector.broadcast %0 : vector<24x1xf32> to vector<24x128xf32>
    %100 = arith.mulf %98, %99 : vector<24x128xf32>
    %c0_63 = arith.constant 0 : index
    %c0_64 = arith.constant 0 : index
    %101 = vector.load %arg2[%c0_63, %c0_64] : memref<24x1xf32, #tpu.memory_space<vmem>>, vector<24x1xf32>
    %102 = vector.broadcast %101 : vector<24x1xf32> to vector<24x128xf32>
    %103 = arith.mulf %100, %102 : vector<24x128xf32>
    %cst_65 = arith.constant dense<0.000000e+00> : vector<128xf32>
    %104 = vector.multi_reduction <add>, %103, %cst_65 [0] : vector<24x128xf32> to vector<128xf32>
    %105 = vector.shape_cast %104 : vector<128xf32> to vector<1x128xf32>
    %106 = arith.truncf %105 : vector<1x128xf32> to vector<1x128xbf16>
    %c0_66 = arith.constant 0 : index
    %c0_67 = arith.constant 0 : index
    %107 = vector.load %arg14[%c0_66, %c0_67] : memref<128x128xbf16, #tpu.memory_space<vmem>>, vector<128x128xbf16>
    %cst_68 = arith.constant dense<0.000000e+00> : vector<1x128xf32>
    %108 = tpu.matmul %106, %107, %cst_68 {dimension_numbers = #tpu.dot_dimension_numbers<[1], [0], [0], [1], [0, 0, 1, 1], [], []>} : vector<1x128xbf16>, vector<128x128xbf16>, vector<1x128xf32> -> vector<1x128xf32>
    %c0_69 = arith.constant 0 : index
    %c0_70 = arith.constant 0 : index
    %109 = vector.load %arg15[%c0_69, %c0_70] : memref<1x128xf32, #tpu.memory_space<vmem>>, vector<1x128xf32>
    %110 = arith.addf %108, %109 : vector<1x128xf32>
    %c0_71 = arith.constant 0 : index
    %c0_72 = arith.constant 0 : index
    %c0_73 = arith.constant 0 : index
    %111 = vector.load %arg16[%c0_71, %c0_72, %c0_73] : memref<1x1x128xf32, #tpu.memory_space<vmem>>, vector<1x1x128xf32>
    %112 = vector.shape_cast %111 : vector<1x1x128xf32> to vector<1x128xf32>
    %113 = vector.shape_cast %110 : vector<1x128xf32> to vector<1x1x128xf32>
    tpu.vector_store %arg16[%c0_71, %c0_72, %c0_73], %113 {strides = array<i32>} : memref<1x1x128xf32, #tpu.memory_space<vmem>>, vector<1x1x128xf32>,
    return
  }
  func.func @transform_0(%arg0: i32) -> (i32, i32) {
    %c0_i32 = arith.constant 0 : i32
    %c0_i32_0 = arith.constant 0 : i32
    return %arg0, %c0_i32 : i32, i32
  }
  func.func @transform_1(%arg0: i32) -> (i32, i32) {
    %c0_i32 = arith.constant 0 : i32
    %c0_i32_0 = arith.constant 0 : i32
    return %arg0, %c0_i32 : i32, i32
  }
  func.func @transform_2(%arg0: i32) -> (i32, i32) {
    %c0_i32 = arith.constant 0 : i32
    %c0_i32_0 = arith.constant 0 : i32
    %c0_i32_1 = arith.constant 0 : i32
    return %c0_i32, %c0_i32_0 : i32, i32
  }
  func.func @transform_3(%arg0: i32) -> (i32, i32) {
    %c0_i32 = arith.constant 0 : i32
    %c0_i32_0 = arith.constant 0 : i32
    %c0_i32_1 = arith.constant 0 : i32
    return %c0_i32, %c0_i32_0 : i32, i32
  }
  func.func @transform_4(%arg0: i32) -> (i32, i32) {
    %c0_i32 = arith.constant 0 : i32
    %c0_i32_0 = arith.constant 0 : i32
    %c0_i32_1 = arith.constant 0 : i32
    return %c0_i32, %c0_i32_0 : i32, i32
  }
  func.func @transform_5(%arg0: i32) -> (i32, i32) {
    %c0_i32 = arith.constant 0 : i32
    %c0_i32_0 = arith.constant 0 : i32
    %c0_i32_1 = arith.constant 0 : i32
    return %c0_i32, %c0_i32_0 : i32, i32
  }
  func.func @transform_6(%arg0: i32) -> (i32, i32) {
    %c0_i32 = arith.constant 0 : i32
    %c0_i32_0 = arith.constant 0 : i32
    %c0_i32_1 = arith.constant 0 : i32
    return %c0_i32, %c0_i32_0 : i32, i32
  }
  func.func @transform_7(%arg0: i32) -> (i32, i32) {
    %c0_i32 = arith.constant 0 : i32
    %c0_i32_0 = arith.constant 0 : i32
    %c0_i32_1 = arith.constant 0 : i32
    return %c0_i32, %c0_i32_0 : i32, i32
  }
  func.func @transform_8(%arg0: i32) -> (i32, i32) {
    %c0_i32 = arith.constant 0 : i32
    %c0_i32_0 = arith.constant 0 : i32
    %c0_i32_1 = arith.constant 0 : i32
    return %c0_i32, %c0_i32_0 : i32, i32
  }
  func.func @transform_9(%arg0: i32) -> (i32, i32) {
    %c0_i32 = arith.constant 0 : i32
    %c0_i32_0 = arith.constant 0 : i32
    %c0_i32_1 = arith.constant 0 : i32
    return %c0_i32, %c0_i32_0 : i32, i32
  }
  func.func @transform_10(%arg0: i32) -> (i32, i32) {
    %c0_i32 = arith.constant 0 : i32
    %c0_i32_0 = arith.constant 0 : i32
    %c0_i32_1 = arith.constant 0 : i32
    return %c0_i32, %c0_i32_0 : i32, i32
  }
  func.func @transform_11(%arg0: i32) -> (i32, i32) {
    %c0_i32 = arith.constant 0 : i32
    %c0_i32_0 = arith.constant 0 : i32
    %c0_i32_1 = arith.constant 0 : i32
    return %c0_i32, %c0_i32_0 : i32, i32
  }
  func.func @transform_12(%arg0: i32) -> (i32, i32) {
    %c0_i32 = arith.constant 0 : i32
    %c0_i32_0 = arith.constant 0 : i32
    %c0_i32_1 = arith.constant 0 : i32
    return %c0_i32, %c0_i32_0 : i32, i32
  }
  func.func @transform_13(%arg0: i32) -> (i32, i32) {
    %c0_i32 = arith.constant 0 : i32
    %c0_i32_0 = arith.constant 0 : i32
    %c0_i32_1 = arith.constant 0 : i32
    return %c0_i32, %c0_i32_0 : i32, i32
  }
  func.func @transform_14(%arg0: i32) -> (i32, i32) {
    %c0_i32 = arith.constant 0 : i32
    %c0_i32_0 = arith.constant 0 : i32
    %c0_i32_1 = arith.constant 0 : i32
    return %c0_i32, %c0_i32_0 : i32, i32
  }
  func.func @transform_15(%arg0: i32) -> (i32, i32, i32) {
    %c0_i32 = arith.constant 0 : i32
    %c0_i32_0 = arith.constant 0 : i32
    %c0_i32_1 = arith.constant 0 : i32
    return %arg0, %c0_i32, %c0_i32_0 : i32, i32, i32
  }
}

</mosaic_0001>

<llo_original>
// kernel: tcn_forward.1
$region0: #{tcn_forward.1}
  #allocation0 [shape = 'u32[]', space=smem, size = 0x4, offset = 0x4, fixed_abs, tag = 'smem constant byte address 0x4 - core index']
  #allocation1 [shape = 'u32[144,128]{1,0:T(1,128)}', space=vmem, size = 0x12000, scoped, tag = 'internal scratch']
  %s0 = inlined_call_operand.vmem [shape: bf16[48,128], index: 0, kind: input, shape index: {}]
  %s1 = inlined_call_operand.vmem [shape: f32[48,1], index: 1, kind: input, shape index: {}]
  %s2 = inlined_call_operand.vmem [shape: f32[24,1], index: 2, kind: input, shape index: {}]
  %s3 = inlined_call_operand.hbm [shape: bf16[384,128], index: 3, kind: input, shape index: {}]
  %s4 = inlined_call_operand.hbm [shape: f32[1,128], index: 4, kind: input, shape index: {}]
  %s5 = inlined_call_operand.hbm [shape: bf16[384,128], index: 5, kind: input, shape index: {}]
  %s6 = inlined_call_operand.hbm [shape: f32[1,128], index: 6, kind: input, shape index: {}]
  %s7 = inlined_call_operand.hbm [shape: bf16[128,128], index: 7, kind: input, shape index: {}]
  %s8 = inlined_call_operand.hbm [shape: f32[1,128], index: 8, kind: input, shape index: {}]
  %s9 = inlined_call_operand.hbm [shape: bf16[384,128], index: 9, kind: input, shape index: {}]
  %s10 = inlined_call_operand.hbm [shape: f32[1,128], index: 10, kind: input, shape index: {}]
  %s11 = inlined_call_operand.vmem [shape: bf16[384,128], index: 11, kind: input, shape index: {}]
  %s12 = inlined_call_operand.hbm [shape: f32[1,128], index: 12, kind: input, shape index: {}]
  %s13 = inlined_call_operand.hbm [shape: bf16[128,128], index: 13, kind: input, shape index: {}]
  %s14 = inlined_call_operand.vmem [shape: f32[1,128], index: 14, kind: input, shape index: {}]
  %s15 = inlined_call_operand.hbm [shape: f32[2,1,128], index: 15, kind: output, shape index: {}]
  %s16 = sld [smem:[#allocation0]]
  $region133: #{tcn_forward.1} parent=0
    _
  %s18 = ssub.s32 1, %s16
  %s19 = scalar_select 0, %s18, %s16
  $region1: #{tcn_forward.1} parent=0
    #allocation2 [shape = 'u8[98304]{0}', space=vmem, size = 0x18000, scoped, tag = 'input window, operand 3, single buffered']
    #allocation3 [shape = 's32[2]{0}', space=sflag, size = 0x8, scoped, tag = 'scoped memory for tcn_forward.1']
    #allocation4 [shape = 's32[2]{0}', space=sflag, size = 0x8, scoped, tag = 'scoped memory for tcn_forward.1']
    #allocation5 [shape = 'u8[512]{0}', space=vmem, size = 0x400, scoped, tag = 'input window, operand 4, single buffered']
    #allocation6 [shape = 's32[1]{0}', space=sflag, size = 0x4, scoped, tag = 'scoped memory for tcn_forward.1']
    #allocation7 [shape = 'u8[98304]{0}', space=vmem, size = 0x18000, scoped, tag = 'input window, operand 5, single buffered']
    #allocation8 [shape = 'u8[512]{0}', space=vmem, size = 0x400, scoped, tag = 'input window, operand 6, single buffered']
    #allocation9 [shape = 's32[1]{0}', space=sflag, size = 0x4, scoped, tag = 'scoped memory for tcn_forward.1']
    #allocation10 [shape = 'u8[32768]{0}', space=vmem, size = 0x8000, scoped, tag = 'input window, operand 7, single buffered']
    #allocation11 [shape = 'u8[512]{0}', space=vmem, size = 0x400, scoped, tag = 'input window, operand 8, single buffered']
    #allocation12 [shape = 's32[1]{0}', space=sflag, size = 0x4, scoped, tag = 'scoped memory for tcn_forward.1']
    #allocation13 [shape = 'u8[98304]{0}', space=vmem, size = 0x18000, scoped, tag = 'input window, operand 9, single buffered']
    #allocation14 [shape = 'u8[512]{0}', space=vmem, size = 0x400, scoped, tag = 'input window, operand 10, single buffered']
    #allocation15 [shape = 's32[1]{0}', space=sflag, size = 0x4, scoped, tag = 'scoped memory for tcn_forward.1']
    #allocation16 [shape = 'u8[512]{0}', space=vmem, size = 0x400, scoped, tag = 'input window, operand 12, single buffered']
    #allocation17 [shape = 'u8[32768]{0}', space=vmem, size = 0x8000, scoped, tag = 'input window, operand 13, single buffered']
    #allocation18 [shape = 's32[1]{0}', space=sflag, size = 0x4, scoped, tag = 'scoped memory for tcn_forward.1']
    #allocation19 [shape = 'u8[1024]{0}', space=vmem, size = 0x400, scoped, tag = 'output window, operand 0']
    %20 = vsyncpa [#allocation3], 0
    %21 = vsyncpa [#allocation6], 0
    %22 = vsyncpa [#allocation9], 0
    %23 = vsyncpa [#allocation12], 0
    %24 = vsyncpa [#allocation15], 0
    %25 = vsyncpa [#allocation18], 0
    %26 = vsyncpa [#allocation4], 0
    %s27 = scalar_lea.sflag [#allocation4], 1
    %28 = vsyncpa %s27, 0
    loop: start=0, step=1, limit=4
    $region2: #{tcn_forward.1} parent=1 // loop_pre_header
      _
    $region3: #{tcn_forward.1} parent=1 // loop_header
      %s30 = sphi 0, %s34
      %p31 = scmp.ge.s32.totalorder %s30, 4
      %s40 = sphi 0, %s42
      %s43 = sphi 0, %s40
      %s44 = sphi 0, %s43
      %s60 = sphi 0, %s44
      %s66 = sphi 0, %s68
      %s69 = sphi 0, %s66
      %s70 = sphi 0, %s69
      %s86 = sphi 0, %s70
      %s90 = sphi 0, %s90
      %s92 = sphi 0, %s90
      %s93 = sphi 0, %s92
      %s107 = sphi 0, %s93
      %s111 = sphi 0, %s111
      %s113 = sphi 0, %s111
      %s114 = sphi 0, %s113
      %s128 = sphi 0, %s114
      %s132 = sphi 0, %s132
      %s134 = sphi 0, %s132
      %s135 = sphi 0, %s134
      %s149 = sphi 0, %s135
      %s153 = sphi 0, %s153
      %s155 = sphi 0, %s153
      %s156 = sphi 0, %s155
      %s170 = sphi 0, %s156
      %s174 = sphi 0, %s174
      %s176 = sphi 0, %s174
      %s177 = sphi 0, %s176
      %s191 = sphi 0, %s177
      %s195 = sphi 0, %s195
      %s197 = sphi 0, %s195
      %s198 = sphi 0, %s197
      %s212 = sphi 0, %s198
      %s216 = sphi 0, %s216
      %s218 = sphi 0, %s216
      %s219 = sphi 0, %s218
      %s233 = sphi 0, %s219
      %s237 = sphi 0, %s237
      %s239 = sphi 0, %s237
      %s240 = sphi 0, %s239
      %s254 = sphi 0, %s240
      %s258 = sphi 0, %s258
      %s260 = sphi 0, %s258
      %s261 = sphi 0, %s260
      %s275 = sphi 0, %s261
      %s279 = sphi 0, %s279
      %s281 = sphi 0, %s279
      %s282 = sphi 0, %s281
      %s296 = sphi 0, %s282
      %s300 = sphi 0, %s300
      %s302 = sphi 0, %s300
      %s303 = sphi 0, %s302
      %s317 = sphi 0, %s303
      %s321 = sphi 0, %s321
      %s323 = sphi 0, %s321
      %s324 = sphi 0, %s323
      %s338 = sphi 0, %s324
      %s342 = sphi 0, %s342
      %s344 = sphi 0, %s342
      %s345 = sphi 0, %s344
      %s359 = sphi 0, %s345
      %s365 = sphi 0, %s367
      %s368 = sphi 0, %s365
      %s369 = sphi 0, %s368
      %s385 = sphi 0, %s369
    $region4: #{tcn_forward.1} parent=1 // loop_header_branch
      %33 = sbr.rel (%p31) target = $region8
    $region5: #{tcn_forward.1} parent=1 // loop_body
      %s35 = ssub.s32 %s30, 1
      %s36 = ssub.s32 %s30, 2
      %s37 = sadd.s32 %s30, 1
      %s38 = ssub.s32 %s30, %s37
      %p39 = scmp.eq.s32.totalorder %s38, 0
      %s41 = sadd.s32 %s40, 1
      %s42 = scalar_select %p39, %s40, %s41
      %p45 = pneg %p39
      %p46 = scmp.eq.s32.totalorder %s30, 1
      %p47 = por %p45, %p46
      %p48 = scmp.ne.s32.totalorder %s40, %s43
      %p49 = scmp.eq.s32.totalorder %s30, 0
      %p50 = por %p48, %p49
      %p51 = scmp.ne.s32.totalorder %s40, %s43
      %p52 = scmp.eq.s32.totalorder %s35, 1
      %p53 = por %p51, %p52
      %p54 = scmp.ne.s32.totalorder %s43, %s44
      %p55 = scmp.eq.s32.totalorder %s35, 0
      %p56 = por %p54, %p55
      %p57 = scmp.ne.s32.totalorder %s43, %s44
      %p58 = scmp.eq.s32.totalorder %s36, 1
      %p59 = por %p57, %p58
      %p61 = scmp.ne.s32.totalorder %s44, %s60
      %p62 = scmp.eq.s32.totalorder %s36, 0
      %p63 = por %p61, %p62
      %s64 = ssub.s32 %s30, %s37
      %p65 = scmp.eq.s32.totalorder %s64, 0
      %s67 = sadd.s32 %s66, 1
      %s68 = scalar_select %p65, %s66, %s67
      %p71 = pneg %p65
      %p72 = scmp.eq.s32.totalorder %s30, 1
      %p73 = por %p71, %p72
      %p74 = scmp.ne.s32.totalorder %s66, %s69
      %p75 = scmp.eq.s32.totalorder %s30, 0
      %p76 = por %p74, %p75
      %p77 = scmp.ne.s32.totalorder %s66, %s69
      %p78 = scmp.eq.s32.totalorder %s35, 1
      %p79 = por %p77, %p78
      %p80 = scmp.ne.s32.totalorder %s69, %s70
      %p81 = scmp.eq.s32.totalorder %s35, 0
      %p82 = por %p80, %p81
      %p83 = scmp.ne.s32.totalorder %s69, %s70
      %p84 = scmp.eq.s32.totalorder %s36, 1
      %p85 = por %p83, %p84
      %p87 = scmp.ne.s32.totalorder %s70, %s86
      %p88 = scmp.eq.s32.totalorder %s36, 0
      %p89 = por %p87, %p88
      %s91 = sadd.s32 %s90, 1
      %p94 = scmp.eq.s32.totalorder %s30, 1
      %p95 = scmp.ne.s32.totalorder %s90, %s92
      %p96 = scmp.eq.s32.totalorder %s30, 0
      %p97 = por %p95, %p96
      %p98 = scmp.ne.s32.totalorder %s90, %s92
      %p99 = scmp.eq.s32.totalorder %s35, 1
      %p100 = por %p98, %p99
      %p101 = scmp.ne.s32.totalorder %s92, %s93
      %p102 = scmp.eq.s32.totalorder %s35, 0
      %p103 = por %p101, %p102
      %p104 = scmp.ne.s32.totalorder %s92, %s93
      %p105 = scmp.eq.s32.totalorder %s36, 1
      %p106 = por %p104, %p105
      %p108 = scmp.ne.s32.totalorder %s93, %s107
      %p109 = scmp.eq.s32.totalorder %s36, 0
      %p110 = por %p108, %p109
      %s112 = sadd.s32 %s111, 1
      %p115 = scmp.eq.s32.totalorder %s30, 1
      %p116 = scmp.ne.s32.totalorder %s111, %s113
      %p117 = scmp.eq.s32.totalorder %s30, 0
      %p118 = por %p116, %p117
      %p119 = scmp.ne.s32.totalorder %s111, %s113
      %p120 = scmp.eq.s32.totalorder %s35, 1
      %p121 = por %p119, %p120
      %p122 = scmp.ne.s32.totalorder %s113, %s114
      %p123 = scmp.eq.s32.totalorder %s35, 0
      %p124 = por %p122, %p123
      %p125 = scmp.ne.s32.totalorder %s113, %s114
      %p126 = scmp.eq.s32.totalorder %s36, 1
      %p127 = por %p125, %p126
      %p129 = scmp.ne.s32.totalorder %s114, %s128
      %p130 = scmp.eq.s32.totalorder %s36, 0
      %p131 = por %p129, %p130
      %s133 = sadd.s32 %s132, 1
      %p136 = scmp.eq.s32.totalorder %s30, 1
      %p137 = scmp.ne.s32.totalorder %s132, %s134
      %p138 = scmp.eq.s32.totalorder %s30, 0
      %p139 = por %p137, %p138
      %p140 = scmp.ne.s32.totalorder %s132, %s134
      %p141 = scmp.eq.s32.totalorder %s35, 1
      %p142 = por %p140, %p141
      %p143 = scmp.ne.s32.totalorder %s134, %s135
      %p144 = scmp.eq.s32.totalorder %s35, 0
      %p145 = por %p143, %p144
      %p146 = scmp.ne.s32.totalorder %s134, %s135
      %p147 = scmp.eq.s32.totalorder %s36, 1
      %p148 = por %p146, %p147
      %p150 = scmp.ne.s32.totalorder %s135, %s149
      %p151 = scmp.eq.s32.totalorder %s36, 0
      %p152 = por %p150, %p151
      %s154 = sadd.s32 %s153, 1
      %p157 = scmp.eq.s32.totalorder %s30, 1
      %p158 = scmp.ne.s32.totalorder %s153, %s155
      %p159 = scmp.eq.s32.totalorder %s30, 0
      %p160 = por %p158, %p159
      %p161 = scmp.ne.s32.totalorder %s153, %s155
      %p162 = scmp.eq.s32.totalorder %s35, 1
      %p163 = por %p161, %p162
      %p164 = scmp.ne.s32.totalorder %s155, %s156
      %p165 = scmp.eq.s32.totalorder %s35, 0
      %p166 = por %p164, %p165
      %p167 = scmp.ne.s32.totalorder %s155, %s156
      %p168 = scmp.eq.s32.totalorder %s36, 1
      %p169 = por %p167, %p168
      %p171 = scmp.ne.s32.totalorder %s156, %s170
      %p172 = scmp.eq.s32.totalorder %s36, 0
      %p173 = por %p171, %p172
      %s175 = sadd.s32 %s174, 1
      %p178 = scmp.eq.s32.totalorder %s30, 1
      %p179 = scmp.ne.s32.totalorder %s174, %s176
      %p180 = scmp.eq.s32.totalorder %s30, 0
      %p181 = por %p179, %p180
      %p182 = scmp.ne.s32.totalorder %s174, %s176
      %p183 = scmp.eq.s32.totalorder %s35, 1
      %p184 = por %p182, %p183
      %p185 = scmp.ne.s32.totalorder %s176, %s177
      %p186 = scmp.eq.s32.totalorder %s35, 0
      %p187 = por %p185, %p186
      %p188 = scmp.ne.s32.totalorder %s176, %s177
      %p189 = scmp.eq.s32.totalorder %s36, 1
      %p190 = por %p188, %p189
      %p192 = scmp.ne.s32.totalorder %s177, %s191
      %p193 = scmp.eq.s32.totalorder %s36, 0
      %p194 = por %p192, %p193
      %s196 = sadd.s32 %s195, 1
      %p199 = scmp.eq.s32.totalorder %s30, 1
      %p200 = scmp.ne.s32.totalorder %s195, %s197
      %p201 = scmp.eq.s32.totalorder %s30, 0
      %p202 = por %p200, %p201
      %p203 = scmp.ne.s32.totalorder %s195, %s197
      %p204 = scmp.eq.s32.totalorder %s35, 1
      %p205 = por %p203, %p204
      %p206 = scmp.ne.s32.totalorder %s197, %s198
      %p207 = scmp.eq.s32.totalorder %s35, 0
      %p208 = por %p206, %p207
      %p209 = scmp.ne.s32.totalorder %s197, %s198
      %p210 = scmp.eq.s32.totalorder %s36, 1
      %p211 = por %p209, %p210
      %p213 = scmp.ne.s32.totalorder %s198, %s212
      %p214 = scmp.eq.s32.totalorder %s36, 0
      %p215 = por %p213, %p214
      %s217 = sadd.s32 %s216, 1
      %p220 = scmp.eq.s32.totalorder %s30, 1
      %p221 = scmp.ne.s32.totalorder %s216, %s218
      %p222 = scmp.eq.s32.totalorder %s30, 0
      %p223 = por %p221, %p222
      %p224 = scmp.ne.s32.totalorder %s216, %s218
      %p225 = scmp.eq.s32.totalorder %s35, 1
      %p226 = por %p224, %p225
      %p227 = scmp.ne.s32.totalorder %s218, %s219
      %p228 = scmp.eq.s32.totalorder %s35, 0
      %p229 = por %p227, %p228
      %p230 = scmp.ne.s32.totalorder %s218, %s219
      %p231 = scmp.eq.s32.totalorder %s36, 1
      %p232 = por %p230, %p231
      %p234 = scmp.ne.s32.totalorder %s219, %s233
      %p235 = scmp.eq.s32.totalorder %s36, 0
      %p236 = por %p234, %p235
      %s238 = sadd.s32 %s237, 1
      %p241 = scmp.eq.s32.totalorder %s30, 1
      %p242 = scmp.ne.s32.totalorder %s237, %s239
      %p243 = scmp.eq.s32.totalorder %s30, 0
      %p244 = por %p242, %p243
      %p245 = scmp.ne.s32.totalorder %s237, %s239
      %p246 = scmp.eq.s32.totalorder %s35, 1
      %p247 = por %p245, %p246
      %p248 = scmp.ne.s32.totalorder %s239, %s240
      %p249 = scmp.eq.s32.totalorder %s35, 0
      %p250 = por %p248, %p249
      %p251 = scmp.ne.s32.totalorder %s239, %s240
      %p252 = scmp.eq.s32.totalorder %s36, 1
      %p253 = por %p251, %p252
      %p255 = scmp.ne.s32.totalorder %s240, %s254
      %p256 = scmp.eq.s32.totalorder %s36, 0
      %p257 = por %p255, %p256
      %s259 = sadd.s32 %s258, 1
      %p262 = scmp.eq.s32.totalorder %s30, 1
      %p263 = scmp.ne.s32.totalorder %s258, %s260
      %p264 = scmp.eq.s32.totalorder %s30, 0
      %p265 = por %p263, %p264
      %p266 = scmp.ne.s32.totalorder %s258, %s260
      %p267 = scmp.eq.s32.totalorder %s35, 1
      %p268 = por %p266, %p267
      %p269 = scmp.ne.s32.totalorder %s260, %s261
      %p270 = scmp.eq.s32.totalorder %s35, 0
      %p271 = por %p269, %p270
      %p272 = scmp.ne.s32.totalorder %s260, %s261
      %p273 = scmp.eq.s32.totalorder %s36, 1
      %p274 = por %p272, %p273
      %p276 = scmp.ne.s32.totalorder %s261, %s275
      %p277 = scmp.eq.s32.totalorder %s36, 0
      %p278 = por %p276, %p277
      %s280 = sadd.s32 %s279, 1
      %p283 = scmp.eq.s32.totalorder %s30, 1
      %p284 = scmp.ne.s32.totalorder %s279, %s281
      %p285 = scmp.eq.s32.totalorder %s30, 0
      %p286 = por %p284, %p285
      %p287 = scmp.ne.s32.totalorder %s279, %s281
      %p288 = scmp.eq.s32.totalorder %s35, 1
      %p289 = por %p287, %p288
      %p290 = scmp.ne.s32.totalorder %s281, %s282
      %p291 = scmp.eq.s32.totalorder %s35, 0
      %p292 = por %p290, %p291
      %p293 = scmp.ne.s32.totalorder %s281, %s282
      %p294 = scmp.eq.s32.totalorder %s36, 1
      %p295 = por %p293, %p294
      %p297 = scmp.ne.s32.totalorder %s282, %s296
      %p298 = scmp.eq.s32.totalorder %s36, 0
      %p299 = por %p297, %p298
      %s301 = sadd.s32 %s300, 1
      %p304 = scmp.eq.s32.totalorder %s30, 1
      %p305 = scmp.ne.s32.totalorder %s300, %s302
      %p306 = scmp.eq.s32.totalorder %s30, 0
      %p307 = por %p305, %p306
      %p308 = scmp.ne.s32.totalorder %s300, %s302
      %p309 = scmp.eq.s32.totalorder %s35, 1
      %p310 = por %p308, %p309
      %p311 = scmp.ne.s32.totalorder %s302, %s303
      %p312 = scmp.eq.s32.totalorder %s35, 0
      %p313 = por %p311, %p312
      %p314 = scmp.ne.s32.totalorder %s302, %s303
      %p315 = scmp.eq.s32.totalorder %s36, 1
      %p316 = por %p314, %p315
      %p318 = scmp.ne.s32.totalorder %s303, %s317
      %p319 = scmp.eq.s32.totalorder %s36, 0
      %p320 = por %p318, %p319
      %s322 = sadd.s32 %s321, 1
      %p325 = scmp.eq.s32.totalorder %s30, 1
      %p326 = scmp.ne.s32.totalorder %s321, %s323
      %p327 = scmp.eq.s32.totalorder %s30, 0
      %p328 = por %p326, %p327
      %p329 = scmp.ne.s32.totalorder %s321, %s323
      %p330 = scmp.eq.s32.totalorder %s35, 1
      %p331 = por %p329, %p330
      %p332 = scmp.ne.s32.totalorder %s323, %s324
      %p333 = scmp.eq.s32.totalorder %s35, 0
      %p334 = por %p332, %p333
      %p335 = scmp.ne.s32.totalorder %s323, %s324
      %p336 = scmp.eq.s32.totalorder %s36, 1
      %p337 = por %p335, %p336
      %p339 = scmp.ne.s32.totalorder %s324, %s338
      %p340 = scmp.eq.s32.totalorder %s36, 0
      %p341 = por %p339, %p340
      %s343 = sadd.s32 %s342, 1
      %p346 = scmp.eq.s32.totalorder %s30, 1
      %p347 = scmp.ne.s32.totalorder %s342, %s344
      %p348 = scmp.eq.s32.totalorder %s30, 0
      %p349 = por %p347, %p348
      %p350 = scmp.ne.s32.totalorder %s342, %s344
      %p351 = scmp.eq.s32.totalorder %s35, 1
      %p352 = por %p350, %p351
      %p353 = scmp.ne.s32.totalorder %s344, %s345
      %p354 = scmp.eq.s32.totalorder %s35, 0
      %p355 = por %p353, %p354
      %p356 = scmp.ne.s32.totalorder %s344, %s345
      %p357 = scmp.eq.s32.totalorder %s36, 1
      %p358 = por %p356, %p357
      %p360 = scmp.ne.s32.totalorder %s345, %s359
      %p361 = scmp.eq.s32.totalorder %s36, 0
      %p362 = por %p360, %p361
      %s363 = ssub.s32 %s30, %s37
      %p364 = scmp.eq.s32.totalorder %s363, 0
      %s366 = sadd.s32 %s365, 1
      %s367 = scalar_select %p364, %s365, %s366
      %p370 = pneg %p364
      %p371 = scmp.eq.s32.totalorder %s30, 1
      %p372 = por %p370, %p371
      %p373 = scmp.ne.s32.totalorder %s365, %s368
      %p374 = scmp.eq.s32.totalorder %s30, 0
      %p375 = por %p373, %p374
      %p376 = scmp.ne.s32.totalorder %s365, %s368
      %p377 = scmp.eq.s32.totalorder %s35, 1
      %p378 = por %p376, %p377
      %p379 = scmp.ne.s32.totalorder %s368, %s369
      %p380 = scmp.eq.s32.totalorder %s35, 0
      %p381 = por %p379, %p380
      %p382 = scmp.ne.s32.totalorder %s368, %s369
      %p383 = scmp.eq.s32.totalorder %s36, 1
      %p384 = por %p382, %p383
      %p386 = scmp.ne.s32.totalorder %s369, %s385
      %p387 = scmp.eq.s32.totalorder %s36, 0
      %p388 = por %p386, %p387
      %p389 = scmp.le.s32.totalorder 1, %s30
      %p390 = scmp.lt.s32.totalorder %s30, 3
      %p391 = pnand %p389, %p390
      %p392 = pneg %p391
      // Predicated region
      $region9: #{tcn_forward.1} parent=5 // pred_check
        _
      $region10: #{tcn_forward.1} parent=5 // pred_check_branch
        %394 = sbr.rel (%p391) target = $region12
      $region11: #{tcn_forward.1} parent=5 // pred_region
        %s395 = ssub.s32 %s30, 1
        // Predicated region
        $region13: #{tcn_forward.1} parent=11 // pred_check
          %p396 = pneg %p103
        $region14: #{tcn_forward.1} parent=11 // pred_check_branch
          %398 = sbr.rel (%p396) target = $region16
        $region15: #{tcn_forward.1} parent=11 // pred_region
          _
        $region16: #{tcn_forward.1} parent=11 // pred_fallthru
          _
        // Predicated region
        $region17: #{tcn_forward.1} parent=11 // pred_check
          %p399 = pneg %p124
        $region18: #{tcn_forward.1} parent=11 // pred_check_branch
          %401 = sbr.rel (%p399) target = $region20
        $region19: #{tcn_forward.1} parent=11 // pred_region
          %s403 = ssub.s32 3072, 3072
          %404 = vsyncadd [#allocation3], %s403
          %s405 = sshll.u32 [#allocation2], 4
          %s406 = int_to_ptr.vmem [resolvable:$true] %s405
          %411 = dma.hbm_to_vmem [thread:$0]  %s3, 3072, %s406, [#allocation3], 64, 64, 4
        $region20: #{tcn_forward.1} parent=11 // pred_fallthru
          _
        // Predicated region
        $region21: #{tcn_forward.1} parent=11 // pred_check
          %p412 = pneg %p145
        $region22: #{tcn_forward.1} parent=11 // pred_check_branch
          %414 = sbr.rel (%p412) target = $region24
        $region23: #{tcn_forward.1} parent=11 // pred_region
          %s416 = ssub.s32 16, 16
          %417 = vsyncadd [#allocation6], %s416
          %s419 = sshll.u32 [#allocation5], 4
          %s420 = int_to_ptr.vmem [resolvable:$true] %s419
          %422 = dma.hbm_to_vmem [thread:$0]  %s4, 16, %s420, [#allocation6]
        $region24: #{tcn_forward.1} parent=11 // pred_fallthru
          _
        // Predicated region
        $region25: #{tcn_forward.1} parent=11 // pred_check
          %p423 = pneg %p166
        $region26: #{tcn_forward.1} parent=11 // pred_check_branch
          %425 = sbr.rel (%p423) target = $region28
        $region27: #{tcn_forward.1} parent=11 // pred_region
          %s427 = ssub.s32 3072, 3072
          %428 = vsyncadd [#allocation6], %s427
          %s429 = sshll.u32 [#allocation7], 4
          %s430 = int_to_ptr.vmem [resolvable:$true] %s429
          %435 = dma.hbm_to_vmem [thread:$0]  %s5, 3072, %s430, [#allocation6], 64, 64, 4
        $region28: #{tcn_forward.1} parent=11 // pred_fallthru
          _
        // Predicated region
        $region29: #{tcn_forward.1} parent=11 // pred_check
          %p436 = pneg %p187
        $region30: #{tcn_forward.1} parent=11 // pred_check_branch
          %438 = sbr.rel (%p436) target = $region32
        $region31: #{tcn_forward.1} parent=11 // pred_region
          %s440 = ssub.s32 16, 16
          %441 = vsyncadd [#allocation9], %s440
          %s443 = sshll.u32 [#allocation8], 4
          %s444 = int_to_ptr.vmem [resolvable:$true] %s443
          %446 = dma.hbm_to_vmem [thread:$0]  %s6, 16, %s444, [#allocation9]
        $region32: #{tcn_forward.1} parent=11 // pred_fallthru
          _
        // Predicated region
        $region33: #{tcn_forward.1} parent=11 // pred_check
          %p447 = pneg %p208
        $region34: #{tcn_forward.1} parent=11 // pred_check_branch
          %449 = sbr.rel (%p447) target = $region36
        $region35: #{tcn_forward.1} parent=11 // pred_region
          %s451 = ssub.s32 1024, 1024
          %452 = vsyncadd [#allocation9], %s451
          %s453 = sshll.u32 [#allocation10], 4
          %s454 = int_to_ptr.vmem [resolvable:$true] %s453
          %459 = dma.hbm_to_vmem [thread:$0]  %s7, 1024, %s454, [#allocation9], 64, 64, 4
        $region36: #{tcn_forward.1} parent=11 // pred_fallthru
          _
        // Predicated region
        $region37: #{tcn_forward.1} parent=11 // pred_check
          %p460 = pneg %p229
        $region38: #{tcn_forward.1} parent=11 // pred_check_branch
          %462 = sbr.rel (%p460) target = $region40
        $region39: #{tcn_forward.1} parent=11 // pred_region
          %s464 = ssub.s32 16, 16
          %465 = vsyncadd [#allocation12], %s464
          %s467 = sshll.u32 [#allocation11], 4
          %s468 = int_to_ptr.vmem [resolvable:$true] %s467
          %470 = dma.hbm_to_vmem [thread:$0]  %s8, 16, %s468, [#allocation12]
        $region40: #{tcn_forward.1} parent=11 // pred_fallthru
          _
        // Predicated region
        $region41: #{tcn_forward.1} parent=11 // pred_check
          %p471 = pneg %p250
        $region42: #{tcn_forward.1} parent=11 // pred_check_branch
          %473 = sbr.rel (%p471) target = $region44
        $region43: #{tcn_forward.1} parent=11 // pred_region
          %s475 = ssub.s32 3072, 3072
          %476 = vsyncadd [#allocation12], %s475
          %s477 = sshll.u32 [#allocation13], 4
          %s478 = int_to_ptr.vmem [resolvable:$true] %s477
          %483 = dma.hbm_to_vmem [thread:$0]  %s9, 3072, %s478, [#allocation12], 64, 64, 4
        $region44: #{tcn_forward.1} parent=11 // pred_fallthru
          _
        // Predicated region
        $region45: #{tcn_forward.1} parent=11 // pred_check
          %p484 = pneg %p271
        $region46: #{tcn_forward.1} parent=11 // pred_check_branch
          %486 = sbr.rel (%p484) target = $region48
        $region47: #{tcn_forward.1} parent=11 // pred_region
          %s488 = ssub.s32 16, 16
          %489 = vsyncadd [#allocation15], %s488
          %s491 = sshll.u32 [#allocation14], 4
          %s492 = int_to_ptr.vmem [resolvable:$true] %s491
          %494 = dma.hbm_to_vmem [thread:$0]  %s10, 16, %s492, [#allocation15]
        $region48: #{tcn_forward.1} parent=11 // pred_fallthru
          _
        // Predicated region
        $region49: #{tcn_forward.1} parent=11 // pred_check
          %p495 = pneg %p292
        $region50: #{tcn_forward.1} parent=11 // pred_check_branch
          %497 = sbr.rel (%p495) target = $region52
        $region51: #{tcn_forward.1} parent=11 // pred_region
          _
        $region52: #{tcn_forward.1} parent=11 // pred_fallthru
          _
        // Predicated region
        $region53: #{tcn_forward.1} parent=11 // pred_check
          %p498 = pneg %p313
        $region54: #{tcn_forward.1} parent=11 // pred_check_branch
          %500 = sbr.rel (%p498) target = $region56
        $region55: #{tcn_forward.1} parent=11 // pred_region
          %s502 = ssub.s32 16, 16
          %503 = vsyncadd [#allocation15], %s502
          %s505 = sshll.u32 [#allocation16], 4
          %s506 = int_to_ptr.vmem [resolvable:$true] %s505
          %508 = dma.hbm_to_vmem [thread:$0]  %s12, 16, %s506, [#allocation15]
        $region56: #{tcn_forward.1} parent=11 // pred_fallthru
          _
        // Predicated region
        $region57: #{tcn_forward.1} parent=11 // pred_check
          %p509 = pneg %p334
        $region58: #{tcn_forward.1} parent=11 // pred_check_branch
          %511 = sbr.rel (%p509) target = $region60
        $region59: #{tcn_forward.1} parent=11 // pred_region
          %s513 = ssub.s32 1024, 1024
          %514 = vsyncadd [#allocation18], %s513
          %s515 = sshll.u32 [#allocation17], 4
          %s516 = int_to_ptr.vmem [resolvable:$true] %s515
          %521 = dma.hbm_to_vmem [thread:$0]  %s13, 1024, %s516, [#allocation18], 64, 64, 4
        $region60: #{tcn_forward.1} parent=11 // pred_fallthru
          _
        // Predicated region
        $region61: #{tcn_forward.1} parent=11 // pred_check
          %p522 = pneg %p355
        $region62: #{tcn_forward.1} parent=11 // pred_check_branch
          %524 = sbr.rel (%p522) target = $region64
        $region63: #{tcn_forward.1} parent=11 // pred_region
          _
        $region64: #{tcn_forward.1} parent=11 // pred_fallthru
          _
      $region12: #{tcn_forward.1} parent=5 // pred_fallthru
        _
      %p525 = scmp.lt.s32.totalorder %s30, 2
      // Predicated region
      $region65: #{tcn_forward.1} parent=5 // pred_check
        %p526 = pneg %p525
      $region66: #{tcn_forward.1} parent=5 // pred_check_branch
        %528 = sbr.rel (%p526) target = $region68
      $region67: #{tcn_forward.1} parent=5 // pred_region
        // Predicated region
        $region69: #{tcn_forward.1} parent=67 // pred_check
          %p529 = pneg %p50
        $region70: #{tcn_forward.1} parent=67 // pred_check_branch
          %531 = sbr.rel (%p529) target = $region72
        $region71: #{tcn_forward.1} parent=67 // pred_region
          %s532 = smul.u32 3, %s30
          %p533 = scmp.lt.s32.totalorder %s532, 5
          %s534 = scalar_select %p533, %s532, 5
          %s535 = smul.addr %s534, 4
          %s536 = scalar_lea.vmem %s0, %s535
          %s537 = smul.u32 3, %s30
        $region72: #{tcn_forward.1} parent=67 // pred_fallthru
          _
        // Predicated region
        $region73: #{tcn_forward.1} parent=67 // pred_check
          %p538 = pneg %p76
        $region74: #{tcn_forward.1} parent=67 // pred_check_branch
          %540 = sbr.rel (%p538) target = $region76
        $region75: #{tcn_forward.1} parent=67 // pred_region
          %s541 = smul.u32 3, %s30
          %p542 = scmp.lt.s32.totalorder %s541, 5
          %s543 = scalar_select %p542, %s541, 5
          %s544 = smul.addr %s543, 8
          %s545 = scalar_lea.vmem %s1, %s544
          %s546 = smul.u32 3, %s30
        $region76: #{tcn_forward.1} parent=67 // pred_fallthru
          _
      $region68: #{tcn_forward.1} parent=5 // pred_fallthru
        _
      %p547 = scmp.le.s32.totalorder 1, %s30
      %p548 = scmp.lt.s32.totalorder %s30, 3
      %p549 = pnand %p547, %p548
      %p550 = pneg %p549
      // Predicated region
      $region77: #{tcn_forward.1} parent=5 // pred_check
        _
      $region78: #{tcn_forward.1} parent=5 // pred_check_branch
        %552 = sbr.rel (%p549) target = $region80
      $region79: #{tcn_forward.1} parent=5 // pred_region
        %s553 = ssub.s32 %s30, 1
        // Predicated region
        $region81: #{tcn_forward.1} parent=79 // pred_check
          %p554 = pneg %p124
        $region82: #{tcn_forward.1} parent=79 // pred_check_branch
          %556 = sbr.rel (%p554) target = $region84
        $region83: #{tcn_forward.1} parent=79 // pred_region
          %557 = dma.done [#allocation3], 3072
        $region84: #{tcn_forward.1} parent=79 // pred_fallthru
          _
        // Predicated region
        $region85: #{tcn_forward.1} parent=79 // pred_check
          %p558 = pneg %p145
        $region86: #{tcn_forward.1} parent=79 // pred_check_branch
          %560 = sbr.rel (%p558) target = $region88
        $region87: #{tcn_forward.1} parent=79 // pred_region
          %561 = dma.done [#allocation6], 16
        $region88: #{tcn_forward.1} parent=79 // pred_fallthru
          _
        // Predicated region
        $region89: #{tcn_forward.1} parent=79 // pred_check
          %p562 = pneg %p166
        $region90: #{tcn_forward.1} parent=79 // pred_check_branch
          %564 = sbr.rel (%p562) target = $region92
        $region91: #{tcn_forward.1} parent=79 // pred_region
          %565 = dma.done [#allocation6], 3072
        $region92: #{tcn_forward.1} parent=79 // pred_fallthru
          _
        // Predicated region
        $region93: #{tcn_forward.1} parent=79 // pred_check
          %p566 = pneg %p187
        $region94: #{tcn_forward.1} parent=79 // pred_check_branch
          %568 = sbr.rel (%p566) target = $region96
        $region95: #{tcn_forward.1} parent=79 // pred_region
          %569 = dma.done [#allocation9], 16
        $region96: #{tcn_forward.1} parent=79 // pred_fallthru
          _
        // Predicated region
        $region97: #{tcn_forward.1} parent=79 // pred_check
          %p570 = pneg %p208
        $region98: #{tcn_forward.1} parent=79 // pred_check_branch
          %572 = sbr.rel (%p570) target = $region100
        $region99: #{tcn_forward.1} parent=79 // pred_region
          %573 = dma.done [#allocation9], 1024
        $region100: #{tcn_forward.1} parent=79 // pred_fallthru
          _
        // Predicated region
        $region101: #{tcn_forward.1} parent=79 // pred_check
          %p574 = pneg %p229
        $region102: #{tcn_forward.1} parent=79 // pred_check_branch
          %576 = sbr.rel (%p574) target = $region104
        $region103: #{tcn_forward.1} parent=79 // pred_region
          %577 = dma.done [#allocation12], 16
        $region104: #{tcn_forward.1} parent=79 // pred_fallthru
          _
        // Predicated region
        $region105: #{tcn_forward.1} parent=79 // pred_check
          %p578 = pneg %p250
        $region106: #{tcn_forward.1} parent=79 // pred_check_branch
          %580 = sbr.rel (%p578) target = $region108
        $region107: #{tcn_forward.1} parent=79 // pred_region
          %581 = dma.done [#allocation12], 3072
        $region108: #{tcn_forward.1} parent=79 // pred_fallthru
          _
        // Predicated region
        $region109: #{tcn_forward.1} parent=79 // pred_check
          %p582 = pneg %p271
        $region110: #{tcn_forward.1} parent=79 // pred_check_branch
          %584 = sbr.rel (%p582) target = $region112
        $region111: #{tcn_forward.1} parent=79 // pred_region
          %585 = dma.done [#allocation15], 16
        $region112: #{tcn_forward.1} parent=79 // pred_fallthru
          _
        // Predicated region
        $region113: #{tcn_forward.1} parent=79 // pred_check
          %p586 = pneg %p313
        $region114: #{tcn_forward.1} parent=79 // pred_check_branch
          %588 = sbr.rel (%p586) target = $region116
        $region115: #{tcn_forward.1} parent=79 // pred_region
          %589 = dma.done [#allocation15], 16
        $region116: #{tcn_forward.1} parent=79 // pred_fallthru
          _
        // Predicated region
        $region117: #{tcn_forward.1} parent=79 // pred_check
          %p590 = pneg %p334
        $region118: #{tcn_forward.1} parent=79 // pred_check_branch
          %592 = sbr.rel (%p590) target = $region120
        $region119: #{tcn_forward.1} parent=79 // pred_region
          %593 = dma.done [#allocation18], 1024
        $region120: #{tcn_forward.1} parent=79 // pred_fallthru
          _
        %s594 = smul.u32 3, %s35
        %p595 = scmp.lt.s32.totalorder %s594, 5
        %s596 = scalar_select %p595, %s594, 5
        %s597 = smul.addr %s596, 4
        %s598 = scalar_lea.vmem %s0, %s597
        %p599 = pneg %p56
        %p600 = pneg %p53
        %s601 = smul.u32 3, %s35
        %p602 = scmp.lt.s32.totalorder %s601, 5
        %s603 = scalar_select %p602, %s601, 5
        %s604 = smul.addr %s603, 8
        %s605 = scalar_lea.vmem %s1, %s604
        %p606 = pneg %p82
        %p607 = pneg %p79
        %p608 = pneg %p103
        %p609 = pneg %p100
        %p610 = pneg %p124
        %p611 = pneg %p121
        %p612 = pneg %p145
        %p613 = pneg %p142
        %p614 = pneg %p166
        %p615 = pneg %p163
        %p616 = pneg %p187
        %p617 = pneg %p184
        %p618 = pneg %p208
        %p619 = pneg %p205
        %p620 = pneg %p229
        %p621 = pneg %p226
        %p622 = pneg %p250
        %p623 = pneg %p247
        %p624 = pneg %p271
        %p625 = pneg %p268
        %p626 = pneg %p292
        %p627 = pneg %p289
        %p628 = pneg %p313
        %p629 = pneg %p310
        %p630 = pneg %p334
        %p631 = pneg %p331
        %p632 = pneg %p355
        %p633 = pneg %p352
        %p634 = pneg %p381
        %p635 = pneg %p378
        %s636 = sand.u32 %s368, 1
        %s637 = scalar_lea.sflag [#allocation4], %s636
        %s638 = sand.u32 %s368, 1
        %s639 = scalar_lea.vmem [#allocation19], %s638
        %s640 = smul.u32 3, %s35
        %p641 = scmp.lt.s32.totalorder %s640, 5
        %s642 = scalar_select %p641, %s640, 5
        %s643 = smul.addr %s642, 4
        %s644 = scalar_lea.vmem %s0, %s643
        %s645 = smul.u32 3, %s35
        %s646 = smul.u32 3, %s35
        %p647 = scmp.lt.s32.totalorder %s646, 5
        %s648 = scalar_select %p647, %s646, 5
        %s649 = smul.addr %s648, 8
        %s650 = scalar_lea.vmem %s1, %s649
        %s651 = smul.u32 3, %s35
        %v653 = vld [vmem:[%s2] sm:$0xff]
        %v654 = vld [vmem:[%s2 + $0x8] sm:$0xff]
        %v655 = vld [vmem:[%s2 + $0x10] sm:$0xff]
        %v656 = vld [vmem:[%s644] sm:$0xf]
        %v657 = vld [vmem:[%s644 + $0x4] sm:$0xf]
        %v658 = vld [vmem:[%s644 + $0x8] sm:$0xf]
        %v659 = vld [vmem:[#allocation2 + $0x80] sm:$0xf]
        %v660 = vld [vmem:[#allocation2 + $0x84] sm:$0xf]
        %v661 = vld [vmem:[#allocation2 + $0x88] sm:$0xf]
        %v662 = vld [vmem:[#allocation2 + $0x8c] sm:$0xf]
        %v663 = vld [vmem:[#allocation2 + $0x90] sm:$0xf]
        %v664 = vld [vmem:[#allocation2 + $0x94] sm:$0xf]
        %v665 = vld [vmem:[#allocation2 + $0x98] sm:$0xf]
        %v666 = vld [vmem:[#allocation2 + $0x9c] sm:$0xf]
        %v667 = vld [vmem:[#allocation2 + $0xa0] sm:$0xf]
        %v668 = vld [vmem:[#allocation2 + $0xa4] sm:$0xf]
        %v669 = vld [vmem:[#allocation2 + $0xa8] sm:$0xf]
        %v670 = vld [vmem:[#allocation2 + $0xac] sm:$0xf]
        %v671 = vld [vmem:[#allocation2 + $0xb0] sm:$0xf]
        %v672 = vld [vmem:[#allocation2 + $0xb4] sm:$0xf]
        %v673 = vld [vmem:[#allocation2 + $0xb8] sm:$0xf]
        %v674 = vld [vmem:[#allocation2 + $0xbc] sm:$0xf]
        %v678 = vunpack.c.l.b16 %v656
        %v679 = vunpack.c.l.b16 %v657
        %v680 = vunpack.c.l.b16 %v658
        %v681 = vpack.c.b16 %v679, %v678
        %v682 = vpack.c.b16 %v680, %v680
        %vm683 = vcmask 1040384
        %v684 = vrot.slane %v681, 7
        %v685 = vrot.slane %v682, 7
        %v686 = vsel %vm683, %v684, %v685
        %vm688 = vcmask 1040384
        %v691 = vsel %vm688, 0, %v684
        %v693 = vld [vmem:[#allocation2] sm:$0xf]
        %v694 = vld [vmem:[#allocation2 + $0x4] sm:$0xf]
        %v695 = vld [vmem:[#allocation2 + $0x8] sm:$0xf]
        %v696 = vld [vmem:[#allocation2 + $0xc] sm:$0xf]
        %v697 = vld [vmem:[#allocation2 + $0x10] sm:$0xf]
        %v698 = vld [vmem:[#allocation2 + $0x14] sm:$0xf]
        %v699 = vld [vmem:[#allocation2 + $0x18] sm:$0xf]
        %v700 = vld [vmem:[#allocation2 + $0x1c] sm:$0xf]
        %v701 = vld [vmem:[#allocation2 + $0x20] sm:$0xf]
        %v702 = vld [vmem:[#allocation2 + $0x24] sm:$0xf]
        %v703 = vld [vmem:[#allocation2 + $0x28] sm:$0xf]
        %v704 = vld [vmem:[#allocation2 + $0x2c] sm:$0xf]
        %v705 = vld [vmem:[#allocation2 + $0x30] sm:$0xf]
        %v706 = vld [vmem:[#allocation2 + $0x34] sm:$0xf]
        %v707 = vld [vmem:[#allocation2 + $0x38] sm:$0xf]
        %v708 = vld [vmem:[#allocation2 + $0x3c] sm:$0xf]
        %v725 = vunpack.c.l.b16 %v693
        %v726 = vunpack.c.l.b16 %v694
        %v727 = vunpack.c.l.b16 %v695
        %v728 = vunpack.c.l.b16 %v696
        %v729 = vunpack.c.l.b16 %v697
        %v730 = vunpack.c.l.b16 %v698
        %v731 = vunpack.c.l.b16 %v699
        %v732 = vunpack.c.l.b16 %v700
        %v733 = vunpack.c.l.b16 %v701
        %v734 = vunpack.c.l.b16 %v702
        %v735 = vunpack.c.l.b16 %v703
        %v736 = vunpack.c.l.b16 %v704
        %v737 = vunpack.c.l.b16 %v705
        %v738 = vunpack.c.l.b16 %v706
        %v739 = vunpack.c.l.b16 %v707
        %v740 = vunpack.c.l.b16 %v708
        %v741 = vpack.c.b16 %v726, %v725
        %v742 = vpack.c.b16 %v728, %v727
        %v743 = vpack.c.b16 %v730, %v729
        %v744 = vpack.c.b16 %v732, %v731
        %v745 = vpack.c.b16 %v734, %v733
        %v746 = vpack.c.b16 %v736, %v735
        %v747 = vpack.c.b16 %v738, %v737
        %v748 = vpack.c.b16 %v740, %v739
        %757 = vmatprep.subr.bf16.mxu0 0
        %758 = vmatpush1.bf16.msra.mxu0 %v748
        %759 = vmatprep.subr.bf16.mxu0 0
        %760 = vmatpush1.bf16.msra.mxu0 %v747
        %761 = vmatprep.subr.bf16.mxu0 0
        %762 = vmatpush1.bf16.msra.mxu0 %v746
        %763 = vmatprep.subr.bf16.mxu0 0
        %764 = vmatpush1.bf16.msra.mxu0 %v745
        %765 = vmatprep.subr.bf16.mxu0 0
        %766 = vmatpush1.bf16.msra.mxu0 %v744
        %767 = vmatprep.subr.bf16.mxu0 0
        %768 = vmatpush1.bf16.msra.mxu0 %v743
        %769 = vmatprep.subr.bf16.mxu0 0
        %770 = vmatpush1.bf16.msra.mxu0 %v742
        %771 = vmatprep.subr.bf16.mxu0 0
        %772 = vmatpush1.bf16.msra.mxu0 %v741
        %773 = vmatprep.subr.bf16.mxu0 0
        %774 = vmatpush2.bf16.msra.mxu0 0
        %775 = vmatprep.subr.bf16.mxu0 0
        %776 = vmatpush2.bf16.msra.mxu0 0
        %777 = vmatprep.subr.bf16.mxu0 0
        %778 = vmatpush2.bf16.msra.mxu0 0
        %779 = vmatprep.subr.bf16.mxu0 0
        %780 = vmatpush2.bf16.msra.mxu0 0
        %781 = vmatprep.subr.bf16.mxu0 0
        %782 = vmatpush2.bf16.msra.mxu0 0
        %783 = vmatprep.subr.bf16.mxu0 0
        %784 = vmatpush2.bf16.msra.mxu0 0
        %785 = vmatprep.subr.bf16.mxu0 0
        %786 = vmatpush2.bf16.msra.mxu0 0
        %787 = vmatprep.subr.bf16.mxu0 0
        %788 = vmatpush2.bf16.msra.mxu0 0
        %789 = vmatprep.mubr.bf16.mxu0 0
        %790 = vmatmul.mubr.bf16.gmra.mxu0 %v691
        %v791 = vpop.f32.mrf.mxu0
        %v792 = vadd.f32 0.0, %v791
        %v793 = vpop.f32.mrf.mxu0
        %v794 = vpop.f32.mrf.mxu0
        %v795 = vadd.f32 0.0, %v794
        %v796 = vpop.f32.mrf.mxu0
        %797 = vmatprep.mubr.bf16.mxu0 0
        %798 = vmatmul.mubr.bf16.gmra.mxu0 %v686
        %v799 = vpop.f32.mrf.mxu0
        %v800 = vadd.f32 0.0, %v799
        %v801 = vpop.f32.mrf.mxu0
        %v802 = vpop.f32.mrf.mxu0
        %v803 = vpop.f32.mrf.mxu0
        %804 = vdwg.mxu0
        %v823 = vunpack.c.l.b16 %v659
        %v824 = vunpack.c.l.b16 %v660
        %v825 = vunpack.c.l.b16 %v661
        %v826 = vunpack.c.l.b16 %v662
        %v827 = vunpack.c.l.b16 %v663
        %v828 = vunpack.c.l.b16 %v664
        %v829 = vunpack.c.l.b16 %v665
        %v830 = vunpack.c.l.b16 %v666
        %v831 = vunpack.c.l.b16 %v667
        %v832 = vunpack.c.l.b16 %v668
        %v833 = vunpack.c.l.b16 %v669
        %v834 = vunpack.c.l.b16 %v670
        %v835 = vunpack.c.l.b16 %v671
        %v836 = vunpack.c.l.b16 %v672
        %v837 = vunpack.c.l.b16 %v673
        %v838 = vunpack.c.l.b16 %v674
        %v839 = vpack.c.b16 %v824, %v823
        %v840 = vpack.c.b16 %v826, %v825
        %v841 = vpack.c.b16 %v828, %v827
        %v842 = vpack.c.b16 %v830, %v829
        %v843 = vpack.c.b16 %v832, %v831
        %v844 = vpack.c.b16 %v834, %v833
        %v845 = vpack.c.b16 %v836, %v835
        %v846 = vpack.c.b16 %v838, %v837
        %855 = vmatprep.subr.bf16.mxu0 0
        %856 = vmatpush1.bf16.msra.mxu0 %v846
        %857 = vmatprep.subr.bf16.mxu0 0
        %858 = vmatpush1.bf16.msra.mxu0 %v845
        %859 = vmatprep.subr.bf16.mxu0 0
        %860 = vmatpush1.bf16.msra.mxu0 %v844
        %861 = vmatprep.subr.bf16.mxu0 0
        %862 = vmatpush1.bf16.msra.mxu0 %v843
        %863 = vmatprep.subr.bf16.mxu0 0
        %864 = vmatpush1.bf16.msra.mxu0 %v842
        %865 = vmatprep.subr.bf16.mxu0 0
        %866 = vmatpush1.bf16.msra.mxu0 %v841
        %867 = vmatprep.subr.bf16.mxu0 0
        %868 = vmatpush1.bf16.msra.mxu0 %v840
        %869 = vmatprep.subr.bf16.mxu0 0
        %870 = vmatpush1.bf16.msra.mxu0 %v839
        %871 = vmatprep.subr.bf16.mxu0 0
        %872 = vmatpush2.bf16.msra.mxu0 0
        %873 = vmatprep.subr.bf16.mxu0 0
        %874 = vmatpush2.bf16.msra.mxu0 0
        %875 = vmatprep.subr.bf16.mxu0 0
        %876 = vmatpush2.bf16.msra.mxu0 0
        %877 = vmatprep.subr.bf16.mxu0 0
        %878 = vmatpush2.bf16.msra.mxu0 0
        %879 = vmatprep.subr.bf16.mxu0 0
        %880 = vmatpush2.bf16.msra.mxu0 0
        %881 = vmatprep.subr.bf16.mxu0 0
        %882 = vmatpush2.bf16.msra.mxu0 0
        %883 = vmatprep.subr.bf16.mxu0 0
        %884 = vmatpush2.bf16.msra.mxu0 0
        %885 = vmatprep.subr.bf16.mxu0 0
        %886 = vmatpush2.bf16.msra.mxu0 0
        %887 = vmatprep.mubr.bf16.mxu0 0
        %888 = vmatmul.mubr.bf16.gmra.mxu0 %v681
        %v889 = vpop.f32.mrf.mxu0
        %v890 = vadd.f32 %v792, %v889
        %v891 = vpop.f32.mrf.mxu0
        %v892 = vpop.f32.mrf.mxu0
        %v893 = vadd.f32 %v795, %v892
        %v894 = vpop.f32.mrf.mxu0
        %895 = vmatprep.mubr.bf16.mxu0 0
        %896 = vmatmul.mubr.bf16.gmra.mxu0 %v682
        %v897 = vpop.f32.mrf.mxu0
        %v898 = vadd.f32 %v800, %v897
        %v899 = vpop.f32.mrf.mxu0
        %v900 = vpop.f32.mrf.mxu0
        %v901 = vpop.f32.mrf.mxu0
        %902 = vdwg.mxu0
        %vm903 = vsmask.f32 256
        %v905 = vshrl.u32 %v681, 16
        %v907 = vrot.slane %v905, 7
        %v908 = vshll.u32 %v681, 16
        %v910 = vor.u32 %v907, %v908
        %v912 = vshrl.u32 %v682, 16
        %v914 = vrot.slane %v912, 7
        %v915 = vshll.u32 %v682, 16
        %v917 = vor.u32 %v914, %v915
        %v918 = vsel %vm903, %v907, %v917
        %vm921 = vmand %vm683, %vm903
        %v922 = vsel %vm921, 0, %v910
        %v923 = vld [vmem:[#allocation2 + $0x40] sm:$0xf]
        %v924 = vld [vmem:[#allocation2 + $0x44] sm:$0xf]
        %v925 = vld [vmem:[#allocation2 + $0x48] sm:$0xf]
        %v926 = vld [vmem:[#allocation2 + $0x4c] sm:$0xf]
        %v927 = vld [vmem:[#allocation2 + $0x50] sm:$0xf]
        %v928 = vld [vmem:[#allocation2 + $0x54] sm:$0xf]
        %v929 = vld [vmem:[#allocation2 + $0x58] sm:$0xf]
        %v930 = vld [vmem:[#allocation2 + $0x5c] sm:$0xf]
        %v931 = vld [vmem:[#allocation2 + $0x60] sm:$0xf]
        %v932 = vld [vmem:[#allocation2 + $0x64] sm:$0xf]
        %v933 = vld [vmem:[#allocation2 + $0x68] sm:$0xf]
        %v934 = vld [vmem:[#allocation2 + $0x6c] sm:$0xf]
        %v935 = vld [vmem:[#allocation2 + $0x70] sm:$0xf]
        %v936 = vld [vmem:[#allocation2 + $0x74] sm:$0xf]
        %v937 = vld [vmem:[#allocation2 + $0x78] sm:$0xf]
        %v938 = vld [vmem:[#allocation2 + $0x7c] sm:$0xf]
        %v955 = vunpack.c.l.b16 %v923
        %v956 = vunpack.c.l.b16 %v924
        %v957 = vunpack.c.l.b16 %v925
        %v958 = vunpack.c.l.b16 %v926
        %v959 = vunpack.c.l.b16 %v927
        %v960 = vunpack.c.l.b16 %v928
        %v961 = vunpack.c.l.b16 %v929
        %v962 = vunpack.c.l.b16 %v930
        %v963 = vunpack.c.l.b16 %v931
        %v964 = vunpack.c.l.b16 %v932
        %v965 = vunpack.c.l.b16 %v933
        %v966 = vunpack.c.l.b16 %v934
        %v967 = vunpack.c.l.b16 %v935
        %v968 = vunpack.c.l.b16 %v936
        %v969 = vunpack.c.l.b16 %v937
        %v970 = vunpack.c.l.b16 %v938
        %v971 = vpack.c.b16 %v956, %v955
        %v972 = vpack.c.b16 %v958, %v957
        %v973 = vpack.c.b16 %v960, %v959
        %v974 = vpack.c.b16 %v962, %v961
        %v975 = vpack.c.b16 %v964, %v963
        %v976 = vpack.c.b16 %v966, %v965
        %v977 = vpack.c.b16 %v968, %v967
        %v978 = vpack.c.b16 %v970, %v969
        %987 = vmatprep.subr.bf16.mxu0 0
        %988 = vmatpush1.bf16.msra.mxu0 %v978
        %989 = vmatprep.subr.bf16.mxu0 0
        %990 = vmatpush1.bf16.msra.mxu0 %v977
        %991 = vmatprep.subr.bf16.mxu0 0
        %992 = vmatpush1.bf16.msra.mxu0 %v976
        %993 = vmatprep.subr.bf16.mxu0 0
        %994 = vmatpush1.bf16.msra.mxu0 %v975
        %995 = vmatprep.subr.bf16.mxu0 0
        %996 = vmatpush1.bf16.msra.mxu0 %v974
        %997 = vmatprep.subr.bf16.mxu0 0
        %998 = vmatpush1.bf16.msra.mxu0 %v973
        %999 = vmatprep.subr.bf16.mxu0 0
        %1000 = vmatpush1.bf16.msra.mxu0 %v972
        %1001 = vmatprep.subr.bf16.mxu0 0
        %1002 = vmatpush1.bf16.msra.mxu0 %v971
        %1003 = vmatprep.subr.bf16.mxu0 0
        %1004 = vmatpush2.bf16.msra.mxu0 0
        %1005 = vmatprep.subr.bf16.mxu0 0
        %1006 = vmatpush2.bf16.msra.mxu0 0
        %1007 = vmatprep.subr.bf16.mxu0 0
        %1008 = vmatpush2.bf16.msra.mxu0 0
        %1009 = vmatprep.subr.bf16.mxu0 0
        %1010 = vmatpush2.bf16.msra.mxu0 0
        %1011 = vmatprep.subr.bf16.mxu0 0
        %1012 = vmatpush2.bf16.msra.mxu0 0
        %1013 = vmatprep.subr.bf16.mxu0 0
        %1014 = vmatpush2.bf16.msra.mxu0 0
        %1015 = vmatprep.subr.bf16.mxu0 0
        %1016 = vmatpush2.bf16.msra.mxu0 0
        %1017 = vmatprep.subr.bf16.mxu0 0
        %1018 = vmatpush2.bf16.msra.mxu0 0
        %1019 = vmatprep.mubr.bf16.mxu0 0
        %1020 = vmatmul.mubr.bf16.gmra.mxu0 %v922
        %v1021 = vpop.f32.mrf.mxu0
        %v1022 = vadd.f32 0.0, %v1021
        %v1023 = vpop.f32.mrf.mxu0
        %v1024 = vpop.f32.mrf.mxu0
        %v1025 = vadd.f32 0.0, %v1024
        %v1026 = vpop.f32.mrf.mxu0
        %1027 = vmatprep.mubr.bf16.mxu0 0
        %1028 = vmatmul.mubr.bf16.gmra.mxu0 %v918
        %v1029 = vpop.f32.mrf.mxu0
        %v1030 = vadd.f32 0.0, %v1029
        %v1031 = vpop.f32.mrf.mxu0
        %v1032 = vpop.f32.mrf.mxu0
        %v1033 = vpop.f32.mrf.mxu0
        %1034 = vdwg.mxu0
        %v1035 = vadd.f32 %v890, %v1022
        %v1036 = vadd.f32 %v893, %v1025
        %v1037 = vadd.f32 %v898, %v1030
        %v1038 = vld [vmem:[#allocation5] sm:$0x1]
        %v1040 = vlaneseq
        %v1041 = vshrl.u32 %v1040, 7
        %v1042 = vsub.s32 0, %v1041
        %v1043 = vrot.slane %v1038, %v1042
        %v1045 = vadd.f32 %v1035, %v1043
        %v1046 = vadd.f32 %v1036, %v1043
        %v1047 = vadd.f32 %v1037, %v1043
        %v1048 = vmax.f32 %v1045, 0.0
        %v1049 = vmax.f32 %v1046, 0.0
        %v1050 = vmax.f32 %v1047, 0.0
        %1052 = vset.pattern.permute.xlu0 0
        %1053 = vperm.xlu0 %1052, %v653
        %v1054 = vpop.permute.xlu0 %1053
        %1057 = vset.pattern.permute.xlu0 0
        %1058 = vperm.xlu0 %1057, %v654
        %v1059 = vpop.permute.xlu0 %1058
        %1062 = vset.pattern.permute.xlu0 0
        %1063 = vperm.xlu0 %1062, %v655
        %v1064 = vpop.permute.xlu0 %1063
        %v1066 = vmul.f32 %v1048, %v1054
        %v1067 = vmul.f32 %v1049, %v1059
        %v1068 = vmul.f32 %v1050, %v1064
        %v1069 = vpack.c.bf16 %v1067, %v1066
        %v1070 = vpack.c.bf16 %v1068, %v1068
        %v1071 = vld [vmem:[#allocation7 + $0x80] sm:$0xf]
        %v1072 = vld [vmem:[#allocation7 + $0x84] sm:$0xf]
        %v1073 = vld [vmem:[#allocation7 + $0x88] sm:$0xf]
        %v1074 = vld [vmem:[#allocation7 + $0x8c] sm:$0xf]
        %v1075 = vld [vmem:[#allocation7 + $0x90] sm:$0xf]
        %v1076 = vld [vmem:[#allocation7 + $0x94] sm:$0xf]
        %v1077 = vld [vmem:[#allocation7 + $0x98] sm:$0xf]
        %v1078 = vld [vmem:[#allocation7 + $0x9c] sm:$0xf]
        %v1079 = vld [vmem:[#allocation7 + $0xa0] sm:$0xf]
        %v1080 = vld [vmem:[#allocation7 + $0xa4] sm:$0xf]
        %v1081 = vld [vmem:[#allocation7 + $0xa8] sm:$0xf]
        %v1082 = vld [vmem:[#allocation7 + $0xac] sm:$0xf]
        %v1083 = vld [vmem:[#allocation7 + $0xb0] sm:$0xf]
        %v1084 = vld [vmem:[#allocation7 + $0xb4] sm:$0xf]
        %v1085 = vld [vmem:[#allocation7 + $0xb8] sm:$0xf]
        %v1086 = vld [vmem:[#allocation7 + $0xbc] sm:$0xf]
        %v1089 = vrot.slane %v1069, 7
        %v1090 = vrot.slane %v1070, 7
        %v1091 = vsel %vm683, %v1089, %v1090
        %v1094 = vsel %vm688, 0, %v1089
        %v1096 = vld [vmem:[#allocation7] sm:$0xf]
        %v1097 = vld [vmem:[#allocation7 + $0x4] sm:$0xf]
        %v1098 = vld [vmem:[#allocation7 + $0x8] sm:$0xf]
        %v1099 = vld [vmem:[#allocation7 + $0xc] sm:$0xf]
        %v1100 = vld [vmem:[#allocation7 + $0x10] sm:$0xf]
        %v1101 = vld [vmem:[#allocation7 + $0x14] sm:$0xf]
        %v1102 = vld [vmem:[#allocation7 + $0x18] sm:$0xf]
        %v1103 = vld [vmem:[#allocation7 + $0x1c] sm:$0xf]
        %v1104 = vld [vmem:[#allocation7 + $0x20] sm:$0xf]
        %v1105 = vld [vmem:[#allocation7 + $0x24] sm:$0xf]
        %v1106 = vld [vmem:[#allocation7 + $0x28] sm:$0xf]
        %v1107 = vld [vmem:[#allocation7 + $0x2c] sm:$0xf]
        %v1108 = vld [vmem:[#allocation7 + $0x30] sm:$0xf]
        %v1109 = vld [vmem:[#allocation7 + $0x34] sm:$0xf]
        %v1110 = vld [vmem:[#allocation7 + $0x38] sm:$0xf]
        %v1111 = vld [vmem:[#allocation7 + $0x3c] sm:$0xf]
        %v1128 = vunpack.c.l.b16 %v1096
        %v1129 = vunpack.c.l.b16 %v1097
        %v1130 = vunpack.c.l.b16 %v1098
        %v1131 = vunpack.c.l.b16 %v1099
        %v1132 = vunpack.c.l.b16 %v1100
        %v1133 = vunpack.c.l.b16 %v1101
        %v1134 = vunpack.c.l.b16 %v1102
        %v1135 = vunpack.c.l.b16 %v1103
        %v1136 = vunpack.c.l.b16 %v1104
        %v1137 = vunpack.c.l.b16 %v1105
        %v1138 = vunpack.c.l.b16 %v1106
        %v1139 = vunpack.c.l.b16 %v1107
        %v1140 = vunpack.c.l.b16 %v1108
        %v1141 = vunpack.c.l.b16 %v1109
        %v1142 = vunpack.c.l.b16 %v1110
        %v1143 = vunpack.c.l.b16 %v1111
        %v1144 = vpack.c.b16 %v1129, %v1128
        %v1145 = vpack.c.b16 %v1131, %v1130
        %v1146 = vpack.c.b16 %v1133, %v1132
        %v1147 = vpack.c.b16 %v1135, %v1134
        %v1148 = vpack.c.b16 %v1137, %v1136
        %v1149 = vpack.c.b16 %v1139, %v1138
        %v1150 = vpack.c.b16 %v1141, %v1140
        %v1151 = vpack.c.b16 %v1143, %v1142
        %1160 = vmatprep.subr.bf16.mxu0 0
        %1161 = vmatpush1.bf16.msra.mxu0 %v1151
        %1162 = vmatprep.subr.bf16.mxu0 0
        %1163 = vmatpush1.bf16.msra.mxu0 %v1150
        %1164 = vmatprep.subr.bf16.mxu0 0
        %1165 = vmatpush1.bf16.msra.mxu0 %v1149
        %1166 = vmatprep.subr.bf16.mxu0 0
        %1167 = vmatpush1.bf16.msra.mxu0 %v1148
        %1168 = vmatprep.subr.bf16.mxu0 0
        %1169 = vmatpush1.bf16.msra.mxu0 %v1147
        %1170 = vmatprep.subr.bf16.mxu0 0
        %1171 = vmatpush1.bf16.msra.mxu0 %v1146
        %1172 = vmatprep.subr.bf16.mxu0 0
        %1173 = vmatpush1.bf16.msra.mxu0 %v1145
        %1174 = vmatprep.subr.bf16.mxu0 0
        %1175 = vmatpush1.bf16.msra.mxu0 %v1144
        %1176 = vmatprep.subr.bf16.mxu0 0
        %1177 = vmatpush2.bf16.msra.mxu0 0
        %1178 = vmatprep.subr.bf16.mxu0 0
        %1179 = vmatpush2.bf16.msra.mxu0 0
        %1180 = vmatprep.subr.bf16.mxu0 0
        %1181 = vmatpush2.bf16.msra.mxu0 0
        %1182 = vmatprep.subr.bf16.mxu0 0
        %1183 = vmatpush2.bf16.msra.mxu0 0
        %1184 = vmatprep.subr.bf16.mxu0 0
        %1185 = vmatpush2.bf16.msra.mxu0 0
        %1186 = vmatprep.subr.bf16.mxu0 0
        %1187 = vmatpush2.bf16.msra.mxu0 0
        %1188 = vmatprep.subr.bf16.mxu0 0
        %1189 = vmatpush2.bf16.msra.mxu0 0
        %1190 = vmatprep.subr.bf16.mxu0 0
        %1191 = vmatpush2.bf16.msra.mxu0 0
        %1192 = vmatprep.mubr.bf16.mxu0 0
        %1193 = vmatmul.mubr.bf16.gmra.mxu0 %v1094
        %v1194 = vpop.f32.mrf.mxu0
        %v1195 = vadd.f32 0.0, %v1194
        %v1196 = vpop.f32.mrf.mxu0
        %v1197 = vpop.f32.mrf.mxu0
        %v1198 = vadd.f32 0.0, %v1197
        %v1199 = vpop.f32.mrf.mxu0
        %1200 = vmatprep.mubr.bf16.mxu0 0
        %1201 = vmatmul.mubr.bf16.gmra.mxu0 %v1091
        %v1202 = vpop.f32.mrf.mxu0
        %v1203 = vadd.f32 0.0, %v1202
        %v1204 = vpop.f32.mrf.mxu0
        %v1205 = vpop.f32.mrf.mxu0
        %v1206 = vpop.f32.mrf.mxu0
        %1207 = vdwg.mxu0
        %v1224 = vunpack.c.l.b16 %v1071
        %v1225 = vunpack.c.l.b16 %v1072
        %v1226 = vunpack.c.l.b16 %v1073
        %v1227 = vunpack.c.l.b16 %v1074
        %v1228 = vunpack.c.l.b16 %v1075
        %v1229 = vunpack.c.l.b16 %v1076
        %v1230 = vunpack.c.l.b16 %v1077
        %v1231 = vunpack.c.l.b16 %v1078
        %v1232 = vunpack.c.l.b16 %v1079
        %v1233 = vunpack.c.l.b16 %v1080
        %v1234 = vunpack.c.l.b16 %v1081
        %v1235 = vunpack.c.l.b16 %v1082
        %v1236 = vunpack.c.l.b16 %v1083
        %v1237 = vunpack.c.l.b16 %v1084
        %v1238 = vunpack.c.l.b16 %v1085
        %v1239 = vunpack.c.l.b16 %v1086
        %v1240 = vpack.c.b16 %v1225, %v1224
        %v1241 = vpack.c.b16 %v1227, %v1226
        %v1242 = vpack.c.b16 %v1229, %v1228
        %v1243 = vpack.c.b16 %v1231, %v1230
        %v1244 = vpack.c.b16 %v1233, %v1232
        %v1245 = vpack.c.b16 %v1235, %v1234
        %v1246 = vpack.c.b16 %v1237, %v1236
        %v1247 = vpack.c.b16 %v1239, %v1238
        %1256 = vmatprep.subr.bf16.mxu0 0
        %1257 = vmatpush1.bf16.msra.mxu0 %v1247
        %1258 = vmatprep.subr.bf16.mxu0 0
        %1259 = vmatpush1.bf16.msra.mxu0 %v1246
        %1260 = vmatprep.subr.bf16.mxu0 0
        %1261 = vmatpush1.bf16.msra.mxu0 %v1245
        %1262 = vmatprep.subr.bf16.mxu0 0
        %1263 = vmatpush1.bf16.msra.mxu0 %v1244
        %1264 = vmatprep.subr.bf16.mxu0 0
        %1265 = vmatpush1.bf16.msra.mxu0 %v1243
        %1266 = vmatprep.subr.bf16.mxu0 0
        %1267 = vmatpush1.bf16.msra.mxu0 %v1242
        %1268 = vmatprep.subr.bf16.mxu0 0
        %1269 = vmatpush1.bf16.msra.mxu0 %v1241
        %1270 = vmatprep.subr.bf16.mxu0 0
        %1271 = vmatpush1.bf16.msra.mxu0 %v1240
        %1272 = vmatprep.subr.bf16.mxu0 0
        %1273 = vmatpush2.bf16.msra.mxu0 0
        %1274 = vmatprep.subr.bf16.mxu0 0
        %1275 = vmatpush2.bf16.msra.mxu0 0
        %1276 = vmatprep.subr.bf16.mxu0 0
        %1277 = vmatpush2.bf16.msra.mxu0 0
        %1278 = vmatprep.subr.bf16.mxu0 0
        %1279 = vmatpush2.bf16.msra.mxu0 0
        %1280 = vmatprep.subr.bf16.mxu0 0
        %1281 = vmatpush2.bf16.msra.mxu0 0
        %1282 = vmatprep.subr.bf16.mxu0 0
        %1283 = vmatpush2.bf16.msra.mxu0 0
        %1284 = vmatprep.subr.bf16.mxu0 0
        %1285 = vmatpush2.bf16.msra.mxu0 0
        %1286 = vmatprep.subr.bf16.mxu0 0
        %1287 = vmatpush2.bf16.msra.mxu0 0
        %1288 = vmatprep.mubr.bf16.mxu0 0
        %1289 = vmatmul.mubr.bf16.gmra.mxu0 %v1069
        %v1290 = vpop.f32.mrf.mxu0
        %v1291 = vadd.f32 %v1195, %v1290
        %v1292 = vpop.f32.mrf.mxu0
        %v1293 = vpop.f32.mrf.mxu0
        %v1294 = vadd.f32 %v1198, %v1293
        %v1295 = vpop.f32.mrf.mxu0
        %1296 = vmatprep.mubr.bf16.mxu0 0
        %1297 = vmatmul.mubr.bf16.gmra.mxu0 %v1070
        %v1298 = vpop.f32.mrf.mxu0
        %v1299 = vadd.f32 %v1203, %v1298
        %v1300 = vpop.f32.mrf.mxu0
        %v1301 = vpop.f32.mrf.mxu0
        %v1302 = vpop.f32.mrf.mxu0
        %1303 = vdwg.mxu0
        %v1305 = vshrl.u32 %v1069, 16
        %v1307 = vrot.slane %v1305, 7
        %v1308 = vshll.u32 %v1069, 16
        %v1310 = vor.u32 %v1307, %v1308
        %v1312 = vshrl.u32 %v1070, 16
        %v1314 = vrot.slane %v1312, 7
        %v1315 = vshll.u32 %v1070, 16
        %v1317 = vor.u32 %v1314, %v1315
        %v1318 = vsel %vm903, %v1307, %v1317
        %v1321 = vsel %vm921, 0, %v1310
        %v1322 = vld [vmem:[#allocation7 + $0x40] sm:$0xf]
        %v1323 = vld [vmem:[#allocation7 + $0x44] sm:$0xf]
        %v1324 = vld [vmem:[#allocation7 + $0x48] sm:$0xf]
        %v1325 = vld [vmem:[#allocation7 + $0x4c] sm:$0xf]
        %v1326 = vld [vmem:[#allocation7 + $0x50] sm:$0xf]
        %v1327 = vld [vmem:[#allocation7 + $0x54] sm:$0xf]
        %v1328 = vld [vmem:[#allocation7 + $0x58] sm:$0xf]
        %v1329 = vld [vmem:[#allocation7 + $0x5c] sm:$0xf]
        %v1330 = vld [vmem:[#allocation7 + $0x60] sm:$0xf]
        %v1331 = vld [vmem:[#allocation7 + $0x64] sm:$0xf]
        %v1332 = vld [vmem:[#allocation7 + $0x68] sm:$0xf]
        %v1333 = vld [vmem:[#allocation7 + $0x6c] sm:$0xf]
        %v1334 = vld [vmem:[#allocation7 + $0x70] sm:$0xf]
        %v1335 = vld [vmem:[#allocation7 + $0x74] sm:$0xf]
        %v1336 = vld [vmem:[#allocation7 + $0x78] sm:$0xf]
        %v1337 = vld [vmem:[#allocation7 + $0x7c] sm:$0xf]
        %v1354 = vunpack.c.l.b16 %v1322
        %v1355 = vunpack.c.l.b16 %v1323
        %v1356 = vunpack.c.l.b16 %v1324
        %v1357 = vunpack.c.l.b16 %v1325
        %v1358 = vunpack.c.l.b16 %v1326
        %v1359 = vunpack.c.l.b16 %v1327
        %v1360 = vunpack.c.l.b16 %v1328
        %v1361 = vunpack.c.l.b16 %v1329
        %v1362 = vunpack.c.l.b16 %v1330
        %v1363 = vunpack.c.l.b16 %v1331
        %v1364 = vunpack.c.l.b16 %v1332
        %v1365 = vunpack.c.l.b16 %v1333
        %v1366 = vunpack.c.l.b16 %v1334
        %v1367 = vunpack.c.l.b16 %v1335
        %v1368 = vunpack.c.l.b16 %v1336
        %v1369 = vunpack.c.l.b16 %v1337
        %v1370 = vpack.c.b16 %v1355, %v1354
        %v1371 = vpack.c.b16 %v1357, %v1356
        %v1372 = vpack.c.b16 %v1359, %v1358
        %v1373 = vpack.c.b16 %v1361, %v1360
        %v1374 = vpack.c.b16 %v1363, %v1362
        %v1375 = vpack.c.b16 %v1365, %v1364
        %v1376 = vpack.c.b16 %v1367, %v1366
        %v1377 = vpack.c.b16 %v1369, %v1368
        %1386 = vmatprep.subr.bf16.mxu0 0
        %1387 = vmatpush1.bf16.msra.mxu0 %v1377
        %1388 = vmatprep.subr.bf16.mxu0 0
        %1389 = vmatpush1.bf16.msra.mxu0 %v1376
        %1390 = vmatprep.subr.bf16.mxu0 0
        %1391 = vmatpush1.bf16.msra.mxu0 %v1375
        %1392 = vmatprep.subr.bf16.mxu0 0
        %1393 = vmatpush1.bf16.msra.mxu0 %v1374
        %1394 = vmatprep.subr.bf16.mxu0 0
        %1395 = vmatpush1.bf16.msra.mxu0 %v1373
        %1396 = vmatprep.subr.bf16.mxu0 0
        %1397 = vmatpush1.bf16.msra.mxu0 %v1372
        %1398 = vmatprep.subr.bf16.mxu0 0
        %1399 = vmatpush1.bf16.msra.mxu0 %v1371
        %1400 = vmatprep.subr.bf16.mxu0 0
        %1401 = vmatpush1.bf16.msra.mxu0 %v1370
        %1402 = vmatprep.subr.bf16.mxu0 0
        %1403 = vmatpush2.bf16.msra.mxu0 0
        %1404 = vmatprep.subr.bf16.mxu0 0
        %1405 = vmatpush2.bf16.msra.mxu0 0
        %1406 = vmatprep.subr.bf16.mxu0 0
        %1407 = vmatpush2.bf16.msra.mxu0 0
        %1408 = vmatprep.subr.bf16.mxu0 0
        %1409 = vmatpush2.bf16.msra.mxu0 0
        %1410 = vmatprep.subr.bf16.mxu0 0
        %1411 = vmatpush2.bf16.msra.mxu0 0
        %1412 = vmatprep.subr.bf16.mxu0 0
        %1413 = vmatpush2.bf16.msra.mxu0 0
        %1414 = vmatprep.subr.bf16.mxu0 0
        %1415 = vmatpush2.bf16.msra.mxu0 0
        %1416 = vmatprep.subr.bf16.mxu0 0
        %1417 = vmatpush2.bf16.msra.mxu0 0
        %1418 = vmatprep.mubr.bf16.mxu0 0
        %1419 = vmatmul.mubr.bf16.gmra.mxu0 %v1321
        %v1420 = vpop.f32.mrf.mxu0
        %v1421 = vadd.f32 0.0, %v1420
        %v1422 = vpop.f32.mrf.mxu0
        %v1423 = vpop.f32.mrf.mxu0
        %v1424 = vadd.f32 0.0, %v1423
        %v1425 = vpop.f32.mrf.mxu0
        %1426 = vmatprep.mubr.bf16.mxu0 0
        %1427 = vmatmul.mubr.bf16.gmra.mxu0 %v1318
        %v1428 = vpop.f32.mrf.mxu0
        %v1429 = vadd.f32 0.0, %v1428
        %v1430 = vpop.f32.mrf.mxu0
        %v1431 = vpop.f32.mrf.mxu0
        %v1432 = vpop.f32.mrf.mxu0
        %1433 = vdwg.mxu0
        %v1434 = vadd.f32 %v1291, %v1421
        %v1435 = vadd.f32 %v1294, %v1424
        %v1436 = vadd.f32 %v1299, %v1429
        %v1437 = vld [vmem:[#allocation8] sm:$0x1]
        %v1439 = vlaneseq
        %v1440 = vshrl.u32 %v1439, 7
        %v1441 = vsub.s32 0, %v1440
        %v1442 = vrot.slane %v1437, %v1441
        %v1444 = vadd.f32 %v1434, %v1442
        %v1445 = vadd.f32 %v1435, %v1442
        %v1446 = vadd.f32 %v1436, %v1442
        %v1447 = vmax.f32 %v1444, 0.0
        %v1448 = vmax.f32 %v1445, 0.0
        %v1449 = vmax.f32 %v1446, 0.0
        %v1450 = vld [vmem:[#allocation10] sm:$0xf]
        %v1451 = vld [vmem:[#allocation10 + $0x4] sm:$0xf]
        %v1452 = vld [vmem:[#allocation10 + $0x8] sm:$0xf]
        %v1453 = vld [vmem:[#allocation10 + $0xc] sm:$0xf]
        %v1454 = vld [vmem:[#allocation10 + $0x10] sm:$0xf]
        %v1455 = vld [vmem:[#allocation10 + $0x14] sm:$0xf]
        %v1456 = vld [vmem:[#allocation10 + $0x18] sm:$0xf]
        %v1457 = vld [vmem:[#allocation10 + $0x1c] sm:$0xf]
        %v1458 = vld [vmem:[#allocation10 + $0x20] sm:$0xf]
        %v1459 = vld [vmem:[#allocation10 + $0x24] sm:$0xf]
        %v1460 = vld [vmem:[#allocation10 + $0x28] sm:$0xf]
        %v1461 = vld [vmem:[#allocation10 + $0x2c] sm:$0xf]
        %v1462 = vld [vmem:[#allocation10 + $0x30] sm:$0xf]
        %v1463 = vld [vmem:[#allocation10 + $0x34] sm:$0xf]
        %v1464 = vld [vmem:[#allocation10 + $0x38] sm:$0xf]
        %v1465 = vld [vmem:[#allocation10 + $0x3c] sm:$0xf]
        %v1466 = vld [vmem:[#allocation11] sm:$0x1]
        %v1468 = vlaneseq
        %v1469 = vshrl.u32 %v1468, 7
        %v1470 = vsub.s32 0, %v1469
        %v1471 = vrot.slane %v1466, %v1470
        %v1489 = vunpack.c.l.b16 %v1450
        %v1490 = vunpack.c.l.b16 %v1451
        %v1491 = vunpack.c.l.b16 %v1452
        %v1492 = vunpack.c.l.b16 %v1453
        %v1493 = vunpack.c.l.b16 %v1454
        %v1494 = vunpack.c.l.b16 %v1455
        %v1495 = vunpack.c.l.b16 %v1456
        %v1496 = vunpack.c.l.b16 %v1457
        %v1497 = vunpack.c.l.b16 %v1458
        %v1498 = vunpack.c.l.b16 %v1459
        %v1499 = vunpack.c.l.b16 %v1460
        %v1500 = vunpack.c.l.b16 %v1461
        %v1501 = vunpack.c.l.b16 %v1462
        %v1502 = vunpack.c.l.b16 %v1463
        %v1503 = vunpack.c.l.b16 %v1464
        %v1504 = vunpack.c.l.b16 %v1465
        %v1505 = vpack.c.b16 %v1490, %v1489
        %v1506 = vpack.c.b16 %v1492, %v1491
        %v1507 = vpack.c.b16 %v1494, %v1493
        %v1508 = vpack.c.b16 %v1496, %v1495
        %v1509 = vpack.c.b16 %v1498, %v1497
        %v1510 = vpack.c.b16 %v1500, %v1499
        %v1511 = vpack.c.b16 %v1502, %v1501
        %v1512 = vpack.c.b16 %v1504, %v1503
        %1521 = vmatprep.subr.bf16.mxu0 0
        %1522 = vmatpush1.bf16.msra.mxu0 %v1512
        %1523 = vmatprep.subr.bf16.mxu0 0
        %1524 = vmatpush1.bf16.msra.mxu0 %v1511
        %1525 = vmatprep.subr.bf16.mxu0 0
        %1526 = vmatpush1.bf16.msra.mxu0 %v1510
        %1527 = vmatprep.subr.bf16.mxu0 0
        %1528 = vmatpush1.bf16.msra.mxu0 %v1509
        %1529 = vmatprep.subr.bf16.mxu0 0
        %1530 = vmatpush1.bf16.msra.mxu0 %v1508
        %1531 = vmatprep.subr.bf16.mxu0 0
        %1532 = vmatpush1.bf16.msra.mxu0 %v1507
        %1533 = vmatprep.subr.bf16.mxu0 0
        %1534 = vmatpush1.bf16.msra.mxu0 %v1506
        %1535 = vmatprep.subr.bf16.mxu0 0
        %1536 = vmatpush1.bf16.msra.mxu0 %v1505
        %1537 = vmatprep.subr.bf16.mxu0 0
        %1538 = vmatpush2.bf16.msra.mxu0 0
        %1539 = vmatprep.subr.bf16.mxu0 0
        %1540 = vmatpush2.bf16.msra.mxu0 0
        %1541 = vmatprep.subr.bf16.mxu0 0
        %1542 = vmatpush2.bf16.msra.mxu0 0
        %1543 = vmatprep.subr.bf16.mxu0 0
        %1544 = vmatpush2.bf16.msra.mxu0 0
        %1545 = vmatprep.subr.bf16.mxu0 0
        %1546 = vmatpush2.bf16.msra.mxu0 0
        %1547 = vmatprep.subr.bf16.mxu0 0
        %1548 = vmatpush2.bf16.msra.mxu0 0
        %1549 = vmatprep.subr.bf16.mxu0 0
        %1550 = vmatpush2.bf16.msra.mxu0 0
        %1551 = vmatprep.subr.bf16.mxu0 0
        %1552 = vmatpush2.bf16.msra.mxu0 0
        %1553 = vmatprep.mubr.bf16.mxu0 0
        %1554 = vmatmul.mubr.bf16.gmra.mxu0 %v681
        %v1555 = vpop.f32.mrf.mxu0
        %v1556 = vadd.f32 %v1471, %v1555
        %v1557 = vpop.f32.mrf.mxu0
        %v1558 = vpop.f32.mrf.mxu0
        %v1559 = vadd.f32 %v1471, %v1558
        %v1560 = vpop.f32.mrf.mxu0
        %1561 = vmatprep.mubr.bf16.mxu0 0
        %1562 = vmatmul.mubr.bf16.gmra.mxu0 %v682
        %v1563 = vpop.f32.mrf.mxu0
        %v1564 = vadd.f32 %v1471, %v1563
        %v1565 = vpop.f32.mrf.mxu0
        %v1566 = vpop.f32.mrf.mxu0
        %v1567 = vpop.f32.mrf.mxu0
        %1568 = vdwg.mxu0
        %v1569 = vadd.f32 %v1447, %v1556
        %v1570 = vadd.f32 %v1448, %v1559
        %v1571 = vadd.f32 %v1449, %v1564
        %v1572 = vmax.f32 %v1569, 0.0
        %v1573 = vmax.f32 %v1570, 0.0
        %v1574 = vmax.f32 %v1571, 0.0
        %v1575 = vmul.f32 %v1572, %v1054
        %v1576 = vmul.f32 %v1573, %v1059
        %v1577 = vmul.f32 %v1574, %v1064
        %v1578 = vpack.c.bf16 %v1576, %v1575
        %v1579 = vpack.c.bf16 %v1577, %v1577
        %v1580 = vld [vmem:[#allocation13 + $0x80] sm:$0xf]
        %v1581 = vld [vmem:[#allocation13 + $0x84] sm:$0xf]
        %v1582 = vld [vmem:[#allocation13 + $0x88] sm:$0xf]
        %v1583 = vld [vmem:[#allocation13 + $0x8c] sm:$0xf]
        %v1584 = vld [vmem:[#allocation13 + $0x90] sm:$0xf]
        %v1585 = vld [vmem:[#allocation13 + $0x94] sm:$0xf]
        %v1586 = vld [vmem:[#allocation13 + $0x98] sm:$0xf]
        %v1587 = vld [vmem:[#allocation13 + $0x9c] sm:$0xf]
        %v1588 = vld [vmem:[#allocation13 + $0xa0] sm:$0xf]
        %v1589 = vld [vmem:[#allocation13 + $0xa4] sm:$0xf]
        %v1590 = vld [vmem:[#allocation13 + $0xa8] sm:$0xf]
        %v1591 = vld [vmem:[#allocation13 + $0xac] sm:$0xf]
        %v1592 = vld [vmem:[#allocation13 + $0xb0] sm:$0xf]
        %v1593 = vld [vmem:[#allocation13 + $0xb4] sm:$0xf]
        %v1594 = vld [vmem:[#allocation13 + $0xb8] sm:$0xf]
        %v1595 = vld [vmem:[#allocation13 + $0xbc] sm:$0xf]
        %vm1598 = vcmask 1041408
        %v1599 = vrot.slane %v1578, 6
        %v1600 = vrot.slane %v1579, 6
        %v1601 = vsel %vm1598, %v1599, %v1600
        %vm1603 = vcmask 1041408
        %v1605 = vsel %vm1603, 0, %v1599
        %v1607 = vld [vmem:[#allocation13] sm:$0xf]
        %v1608 = vld [vmem:[#allocation13 + $0x4] sm:$0xf]
        %v1609 = vld [vmem:[#allocation13 + $0x8] sm:$0xf]
        %v1610 = vld [vmem:[#allocation13 + $0xc] sm:$0xf]
        %v1611 = vld [vmem:[#allocation13 + $0x10] sm:$0xf]
        %v1612 = vld [vmem:[#allocation13 + $0x14] sm:$0xf]
        %v1613 = vld [vmem:[#allocation13 + $0x18] sm:$0xf]
        %v1614 = vld [vmem:[#allocation13 + $0x1c] sm:$0xf]
        %v1615 = vld [vmem:[#allocation13 + $0x20] sm:$0xf]
        %v1616 = vld [vmem:[#allocation13 + $0x24] sm:$0xf]
        %v1617 = vld [vmem:[#allocation13 + $0x28] sm:$0xf]
        %v1618 = vld [vmem:[#allocation13 + $0x2c] sm:$0xf]
        %v1619 = vld [vmem:[#allocation13 + $0x30] sm:$0xf]
        %v1620 = vld [vmem:[#allocation13 + $0x34] sm:$0xf]
        %v1621 = vld [vmem:[#allocation13 + $0x38] sm:$0xf]
        %v1622 = vld [vmem:[#allocation13 + $0x3c] sm:$0xf]
        %v1639 = vunpack.c.l.b16 %v1607
        %v1640 = vunpack.c.l.b16 %v1608
        %v1641 = vunpack.c.l.b16 %v1609
        %v1642 = vunpack.c.l.b16 %v1610
        %v1643 = vunpack.c.l.b16 %v1611
        %v1644 = vunpack.c.l.b16 %v1612
        %v1645 = vunpack.c.l.b16 %v1613
        %v1646 = vunpack.c.l.b16 %v1614
        %v1647 = vunpack.c.l.b16 %v1615
        %v1648 = vunpack.c.l.b16 %v1616
        %v1649 = vunpack.c.l.b16 %v1617
        %v1650 = vunpack.c.l.b16 %v1618
        %v1651 = vunpack.c.l.b16 %v1619
        %v1652 = vunpack.c.l.b16 %v1620
        %v1653 = vunpack.c.l.b16 %v1621
        %v1654 = vunpack.c.l.b16 %v1622
        %v1655 = vpack.c.b16 %v1640, %v1639
        %v1656 = vpack.c.b16 %v1642, %v1641
        %v1657 = vpack.c.b16 %v1644, %v1643
        %v1658 = vpack.c.b16 %v1646, %v1645
        %v1659 = vpack.c.b16 %v1648, %v1647
        %v1660 = vpack.c.b16 %v1650, %v1649
        %v1661 = vpack.c.b16 %v1652, %v1651
        %v1662 = vpack.c.b16 %v1654, %v1653
        %1671 = vmatprep.subr.bf16.mxu0 0
        %1672 = vmatpush1.bf16.msra.mxu0 %v1662
        %1673 = vmatprep.subr.bf16.mxu0 0
        %1674 = vmatpush1.bf16.msra.mxu0 %v1661
        %1675 = vmatprep.subr.bf16.mxu0 0
        %1676 = vmatpush1.bf16.msra.mxu0 %v1660
        %1677 = vmatprep.subr.bf16.mxu0 0
        %1678 = vmatpush1.bf16.msra.mxu0 %v1659
        %1679 = vmatprep.subr.bf16.mxu0 0
        %1680 = vmatpush1.bf16.msra.mxu0 %v1658
        %1681 = vmatprep.subr.bf16.mxu0 0
        %1682 = vmatpush1.bf16.msra.mxu0 %v1657
        %1683 = vmatprep.subr.bf16.mxu0 0
        %1684 = vmatpush1.bf16.msra.mxu0 %v1656
        %1685 = vmatprep.subr.bf16.mxu0 0
        %1686 = vmatpush1.bf16.msra.mxu0 %v1655
        %1687 = vmatprep.subr.bf16.mxu0 0
        %1688 = vmatpush2.bf16.msra.mxu0 0
        %1689 = vmatprep.subr.bf16.mxu0 0
        %1690 = vmatpush2.bf16.msra.mxu0 0
        %1691 = vmatprep.subr.bf16.mxu0 0
        %1692 = vmatpush2.bf16.msra.mxu0 0
        %1693 = vmatprep.subr.bf16.mxu0 0
        %1694 = vmatpush2.bf16.msra.mxu0 0
        %1695 = vmatprep.subr.bf16.mxu0 0
        %1696 = vmatpush2.bf16.msra.mxu0 0
        %1697 = vmatprep.subr.bf16.mxu0 0
        %1698 = vmatpush2.bf16.msra.mxu0 0
        %1699 = vmatprep.subr.bf16.mxu0 0
        %1700 = vmatpush2.bf16.msra.mxu0 0
        %1701 = vmatprep.subr.bf16.mxu0 0
        %1702 = vmatpush2.bf16.msra.mxu0 0
        %1703 = vmatprep.mubr.bf16.mxu0 0
        %1704 = vmatmul.mubr.bf16.gmra.mxu0 %v1605
        %v1705 = vpop.f32.mrf.mxu0
        %v1706 = vadd.f32 0.0, %v1705
        %v1707 = vpop.f32.mrf.mxu0
        %v1708 = vpop.f32.mrf.mxu0
        %v1709 = vadd.f32 0.0, %v1708
        %v1710 = vpop.f32.mrf.mxu0
        %1711 = vmatprep.mubr.bf16.mxu0 0
        %1712 = vmatmul.mubr.bf16.gmra.mxu0 %v1601
        %v1713 = vpop.f32.mrf.mxu0
        %v1714 = vadd.f32 0.0, %v1713
        %v1715 = vpop.f32.mrf.mxu0
        %v1716 = vpop.f32.mrf.mxu0
        %v1717 = vpop.f32.mrf.mxu0
        %1718 = vdwg.mxu0
        %v1735 = vunpack.c.l.b16 %v1580
        %v1736 = vunpack.c.l.b16 %v1581
        %v1737 = vunpack.c.l.b16 %v1582
        %v1738 = vunpack.c.l.b16 %v1583
        %v1739 = vunpack.c.l.b16 %v1584
        %v1740 = vunpack.c.l.b16 %v1585
        %v1741 = vunpack.c.l.b16 %v1586
        %v1742 = vunpack.c.l.b16 %v1587
        %v1743 = vunpack.c.l.b16 %v1588
        %v1744 = vunpack.c.l.b16 %v1589
        %v1745 = vunpack.c.l.b16 %v1590
        %v1746 = vunpack.c.l.b16 %v1591
        %v1747 = vunpack.c.l.b16 %v1592
        %v1748 = vunpack.c.l.b16 %v1593
        %v1749 = vunpack.c.l.b16 %v1594
        %v1750 = vunpack.c.l.b16 %v1595
        %v1751 = vpack.c.b16 %v1736, %v1735
        %v1752 = vpack.c.b16 %v1738, %v1737
        %v1753 = vpack.c.b16 %v1740, %v1739
        %v1754 = vpack.c.b16 %v1742, %v1741
        %v1755 = vpack.c.b16 %v1744, %v1743
        %v1756 = vpack.c.b16 %v1746, %v1745
        %v1757 = vpack.c.b16 %v1748, %v1747
        %v1758 = vpack.c.b16 %v1750, %v1749
        %1767 = vmatprep.subr.bf16.mxu0 0
        %1768 = vmatpush1.bf16.msra.mxu0 %v1758
        %1769 = vmatprep.subr.bf16.mxu0 0
        %1770 = vmatpush1.bf16.msra.mxu0 %v1757
        %1771 = vmatprep.subr.bf16.mxu0 0
        %1772 = vmatpush1.bf16.msra.mxu0 %v1756
        %1773 = vmatprep.subr.bf16.mxu0 0
        %1774 = vmatpush1.bf16.msra.mxu0 %v1755
        %1775 = vmatprep.subr.bf16.mxu0 0
        %1776 = vmatpush1.bf16.msra.mxu0 %v1754
        %1777 = vmatprep.subr.bf16.mxu0 0
        %1778 = vmatpush1.bf16.msra.mxu0 %v1753
        %1779 = vmatprep.subr.bf16.mxu0 0
        %1780 = vmatpush1.bf16.msra.mxu0 %v1752
        %1781 = vmatprep.subr.bf16.mxu0 0
        %1782 = vmatpush1.bf16.msra.mxu0 %v1751
        %1783 = vmatprep.subr.bf16.mxu0 0
        %1784 = vmatpush2.bf16.msra.mxu0 0
        %1785 = vmatprep.subr.bf16.mxu0 0
        %1786 = vmatpush2.bf16.msra.mxu0 0
        %1787 = vmatprep.subr.bf16.mxu0 0
        %1788 = vmatpush2.bf16.msra.mxu0 0
        %1789 = vmatprep.subr.bf16.mxu0 0
        %1790 = vmatpush2.bf16.msra.mxu0 0
        %1791 = vmatprep.subr.bf16.mxu0 0
        %1792 = vmatpush2.bf16.msra.mxu0 0
        %1793 = vmatprep.subr.bf16.mxu0 0
        %1794 = vmatpush2.bf16.msra.mxu0 0
        %1795 = vmatprep.subr.bf16.mxu0 0
        %1796 = vmatpush2.bf16.msra.mxu0 0
        %1797 = vmatprep.subr.bf16.mxu0 0
        %1798 = vmatpush2.bf16.msra.mxu0 0
        %1799 = vmatprep.mubr.bf16.mxu0 0
        %1800 = vmatmul.mubr.bf16.gmra.mxu0 %v1578
        %v1801 = vpop.f32.mrf.mxu0
        %v1802 = vadd.f32 %v1706, %v1801
        %v1803 = vpop.f32.mrf.mxu0
        %v1804 = vpop.f32.mrf.mxu0
        %v1805 = vadd.f32 %v1709, %v1804
        %v1806 = vpop.f32.mrf.mxu0
        %1807 = vmatprep.mubr.bf16.mxu0 0
        %1808 = vmatmul.mubr.bf16.gmra.mxu0 %v1579
        %v1809 = vpop.f32.mrf.mxu0
        %v1810 = vadd.f32 %v1714, %v1809
        %v1811 = vpop.f32.mrf.mxu0
        %v1812 = vpop.f32.mrf.mxu0
        %v1813 = vpop.f32.mrf.mxu0
        %1814 = vdwg.mxu0
        %v1815 = vrot.slane %v1578, 7
        %v1816 = vrot.slane %v1579, 7
        %v1817 = vsel %vm683, %v1815, %v1816
        %v1820 = vsel %vm688, 0, %v1815
        %v1822 = vld [vmem:[#allocation13 + $0x40] sm:$0xf]
        %v1823 = vld [vmem:[#allocation13 + $0x44] sm:$0xf]
        %v1824 = vld [vmem:[#allocation13 + $0x48] sm:$0xf]
        %v1825 = vld [vmem:[#allocation13 + $0x4c] sm:$0xf]
        %v1826 = vld [vmem:[#allocation13 + $0x50] sm:$0xf]
        %v1827 = vld [vmem:[#allocation13 + $0x54] sm:$0xf]
        %v1828 = vld [vmem:[#allocation13 + $0x58] sm:$0xf]
        %v1829 = vld [vmem:[#allocation13 + $0x5c] sm:$0xf]
        %v1830 = vld [vmem:[#allocation13 + $0x60] sm:$0xf]
        %v1831 = vld [vmem:[#allocation13 + $0x64] sm:$0xf]
        %v1832 = vld [vmem:[#allocation13 + $0x68] sm:$0xf]
        %v1833 = vld [vmem:[#allocation13 + $0x6c] sm:$0xf]
        %v1834 = vld [vmem:[#allocation13 + $0x70] sm:$0xf]
        %v1835 = vld [vmem:[#allocation13 + $0x74] sm:$0xf]
        %v1836 = vld [vmem:[#allocation13 + $0x78] sm:$0xf]
        %v1837 = vld [vmem:[#allocation13 + $0x7c] sm:$0xf]
        %v1854 = vunpack.c.l.b16 %v1822
        %v1855 = vunpack.c.l.b16 %v1823
        %v1856 = vunpack.c.l.b16 %v1824
        %v1857 = vunpack.c.l.b16 %v1825
        %v1858 = vunpack.c.l.b16 %v1826
        %v1859 = vunpack.c.l.b16 %v1827
        %v1860 = vunpack.c.l.b16 %v1828
        %v1861 = vunpack.c.l.b16 %v1829
        %v1862 = vunpack.c.l.b16 %v1830
        %v1863 = vunpack.c.l.b16 %v1831
        %v1864 = vunpack.c.l.b16 %v1832
        %v1865 = vunpack.c.l.b16 %v1833
        %v1866 = vunpack.c.l.b16 %v1834
        %v1867 = vunpack.c.l.b16 %v1835
        %v1868 = vunpack.c.l.b16 %v1836
        %v1869 = vunpack.c.l.b16 %v1837
        %v1870 = vpack.c.b16 %v1855, %v1854
        %v1871 = vpack.c.b16 %v1857, %v1856
        %v1872 = vpack.c.b16 %v1859, %v1858
        %v1873 = vpack.c.b16 %v1861, %v1860
        %v1874 = vpack.c.b16 %v1863, %v1862
        %v1875 = vpack.c.b16 %v1865, %v1864
        %v1876 = vpack.c.b16 %v1867, %v1866
        %v1877 = vpack.c.b16 %v1869, %v1868
        %1886 = vmatprep.subr.bf16.mxu0 0
        %1887 = vmatpush1.bf16.msra.mxu0 %v1877
        %1888 = vmatprep.subr.bf16.mxu0 0
        %1889 = vmatpush1.bf16.msra.mxu0 %v1876
        %1890 = vmatprep.subr.bf16.mxu0 0
        %1891 = vmatpush1.bf16.msra.mxu0 %v1875
        %1892 = vmatprep.subr.bf16.mxu0 0
        %1893 = vmatpush1.bf16.msra.mxu0 %v1874
        %1894 = vmatprep.subr.bf16.mxu0 0
        %1895 = vmatpush1.bf16.msra.mxu0 %v1873
        %1896 = vmatprep.subr.bf16.mxu0 0
        %1897 = vmatpush1.bf16.msra.mxu0 %v1872
        %1898 = vmatprep.subr.bf16.mxu0 0
        %1899 = vmatpush1.bf16.msra.mxu0 %v1871
        %1900 = vmatprep.subr.bf16.mxu0 0
        %1901 = vmatpush1.bf16.msra.mxu0 %v1870
        %1902 = vmatprep.subr.bf16.mxu0 0
        %1903 = vmatpush2.bf16.msra.mxu0 0
        %1904 = vmatprep.subr.bf16.mxu0 0
        %1905 = vmatpush2.bf16.msra.mxu0 0
        %1906 = vmatprep.subr.bf16.mxu0 0
        %1907 = vmatpush2.bf16.msra.mxu0 0
        %1908 = vmatprep.subr.bf16.mxu0 0
        %1909 = vmatpush2.bf16.msra.mxu0 0
        %1910 = vmatprep.subr.bf16.mxu0 0
        %1911 = vmatpush2.bf16.msra.mxu0 0
        %1912 = vmatprep.subr.bf16.mxu0 0
        %1913 = vmatpush2.bf16.msra.mxu0 0
        %1914 = vmatprep.subr.bf16.mxu0 0
        %1915 = vmatpush2.bf16.msra.mxu0 0
        %1916 = vmatprep.subr.bf16.mxu0 0
        %1917 = vmatpush2.bf16.msra.mxu0 0
        %1918 = vmatprep.mubr.bf16.mxu0 0
        %1919 = vmatmul.mubr.bf16.gmra.mxu0 %v1820
        %v1920 = vpop.f32.mrf.mxu0
        %v1921 = vadd.f32 0.0, %v1920
        %v1922 = vpop.f32.mrf.mxu0
        %v1923 = vpop.f32.mrf.mxu0
        %v1924 = vadd.f32 0.0, %v1923
        %v1925 = vpop.f32.mrf.mxu0
        %1926 = vmatprep.mubr.bf16.mxu0 0
        %1927 = vmatmul.mubr.bf16.gmra.mxu0 %v1817
        %v1928 = vpop.f32.mrf.mxu0
        %v1929 = vadd.f32 0.0, %v1928
        %v1930 = vpop.f32.mrf.mxu0
        %v1931 = vpop.f32.mrf.mxu0
        %v1932 = vpop.f32.mrf.mxu0
        %1933 = vdwg.mxu0
        %v1934 = vadd.f32 %v1802, %v1921
        %v1935 = vadd.f32 %v1805, %v1924
        %v1936 = vadd.f32 %v1810, %v1929
        %v1937 = vld [vmem:[#allocation14] sm:$0x1]
        %v1939 = vlaneseq
        %v1940 = vshrl.u32 %v1939, 7
        %v1941 = vsub.s32 0, %v1940
        %v1942 = vrot.slane %v1937, %v1941
        %v1944 = vadd.f32 %v1934, %v1942
        %v1945 = vadd.f32 %v1935, %v1942
        %v1946 = vadd.f32 %v1936, %v1942
        %v1947 = vmax.f32 %v1944, 0.0
        %v1948 = vmax.f32 %v1945, 0.0
        %v1949 = vmax.f32 %v1946, 0.0
        %v1950 = vmul.f32 %v1947, %v1054
        %v1951 = vmul.f32 %v1948, %v1059
        %v1952 = vmul.f32 %v1949, %v1064
        %v1953 = vpack.c.bf16 %v1951, %v1950
        %v1954 = vpack.c.bf16 %v1952, %v1952
        %v1955 = vld [vmem:[%s11 + $0x80] sm:$0xf]
        %v1956 = vld [vmem:[%s11 + $0x84] sm:$0xf]
        %v1957 = vld [vmem:[%s11 + $0x88] sm:$0xf]
        %v1958 = vld [vmem:[%s11 + $0x8c] sm:$0xf]
        %v1959 = vld [vmem:[%s11 + $0x90] sm:$0xf]
        %v1960 = vld [vmem:[%s11 + $0x94] sm:$0xf]
        %v1961 = vld [vmem:[%s11 + $0x98] sm:$0xf]
        %v1962 = vld [vmem:[%s11 + $0x9c] sm:$0xf]
        %v1963 = vld [vmem:[%s11 + $0xa0] sm:$0xf]
        %v1964 = vld [vmem:[%s11 + $0xa4] sm:$0xf]
        %v1965 = vld [vmem:[%s11 + $0xa8] sm:$0xf]
        %v1966 = vld [vmem:[%s11 + $0xac] sm:$0xf]
        %v1967 = vld [vmem:[%s11 + $0xb0] sm:$0xf]
        %v1968 = vld [vmem:[%s11 + $0xb4] sm:$0xf]
        %v1969 = vld [vmem:[%s11 + $0xb8] sm:$0xf]
        %v1970 = vld [vmem:[%s11 + $0xbc] sm:$0xf]
        %v1973 = vrot.slane %v1953, 6
        %v1974 = vrot.slane %v1954, 6
        %v1975 = vsel %vm1598, %v1973, %v1974
        %v1978 = vsel %vm1603, 0, %v1973
        %v1980 = vld [vmem:[%s11] sm:$0xf]
        %v1981 = vld [vmem:[%s11 + $0x4] sm:$0xf]
        %v1982 = vld [vmem:[%s11 + $0x8] sm:$0xf]
        %v1983 = vld [vmem:[%s11 + $0xc] sm:$0xf]
        %v1984 = vld [vmem:[%s11 + $0x10] sm:$0xf]
        %v1985 = vld [vmem:[%s11 + $0x14] sm:$0xf]
        %v1986 = vld [vmem:[%s11 + $0x18] sm:$0xf]
        %v1987 = vld [vmem:[%s11 + $0x1c] sm:$0xf]
        %v1988 = vld [vmem:[%s11 + $0x20] sm:$0xf]
        %v1989 = vld [vmem:[%s11 + $0x24] sm:$0xf]
        %v1990 = vld [vmem:[%s11 + $0x28] sm:$0xf]
        %v1991 = vld [vmem:[%s11 + $0x2c] sm:$0xf]
        %v1992 = vld [vmem:[%s11 + $0x30] sm:$0xf]
        %v1993 = vld [vmem:[%s11 + $0x34] sm:$0xf]
        %v1994 = vld [vmem:[%s11 + $0x38] sm:$0xf]
        %v1995 = vld [vmem:[%s11 + $0x3c] sm:$0xf]
        %v2012 = vunpack.c.l.b16 %v1980
        %v2013 = vunpack.c.l.b16 %v1981
        %v2014 = vunpack.c.l.b16 %v1982
        %v2015 = vunpack.c.l.b16 %v1983
        %v2016 = vunpack.c.l.b16 %v1984
        %v2017 = vunpack.c.l.b16 %v1985
        %v2018 = vunpack.c.l.b16 %v1986
        %v2019 = vunpack.c.l.b16 %v1987
        %v2020 = vunpack.c.l.b16 %v1988
        %v2021 = vunpack.c.l.b16 %v1989
        %v2022 = vunpack.c.l.b16 %v1990
        %v2023 = vunpack.c.l.b16 %v1991
        %v2024 = vunpack.c.l.b16 %v1992
        %v2025 = vunpack.c.l.b16 %v1993
        %v2026 = vunpack.c.l.b16 %v1994
        %v2027 = vunpack.c.l.b16 %v1995
        %v2028 = vpack.c.b16 %v2013, %v2012
        %v2029 = vpack.c.b16 %v2015, %v2014
        %v2030 = vpack.c.b16 %v2017, %v2016
        %v2031 = vpack.c.b16 %v2019, %v2018
        %v2032 = vpack.c.b16 %v2021, %v2020
        %v2033 = vpack.c.b16 %v2023, %v2022
        %v2034 = vpack.c.b16 %v2025, %v2024
        %v2035 = vpack.c.b16 %v2027, %v2026
        %2044 = vmatprep.subr.bf16.mxu0 0
        %2045 = vmatpush1.bf16.msra.mxu0 %v2035
        %2046 = vmatprep.subr.bf16.mxu0 0
        %2047 = vmatpush1.bf16.msra.mxu0 %v2034
        %2048 = vmatprep.subr.bf16.mxu0 0
        %2049 = vmatpush1.bf16.msra.mxu0 %v2033
        %2050 = vmatprep.subr.bf16.mxu0 0
        %2051 = vmatpush1.bf16.msra.mxu0 %v2032
        %2052 = vmatprep.subr.bf16.mxu0 0
        %2053 = vmatpush1.bf16.msra.mxu0 %v2031
        %2054 = vmatprep.subr.bf16.mxu0 0
        %2055 = vmatpush1.bf16.msra.mxu0 %v2030
        %2056 = vmatprep.subr.bf16.mxu0 0
        %2057 = vmatpush1.bf16.msra.mxu0 %v2029
        %2058 = vmatprep.subr.bf16.mxu0 0
        %2059 = vmatpush1.bf16.msra.mxu0 %v2028
        %2060 = vmatprep.subr.bf16.mxu0 0
        %2061 = vmatpush2.bf16.msra.mxu0 0
        %2062 = vmatprep.subr.bf16.mxu0 0
        %2063 = vmatpush2.bf16.msra.mxu0 0
        %2064 = vmatprep.subr.bf16.mxu0 0
        %2065 = vmatpush2.bf16.msra.mxu0 0
        %2066 = vmatprep.subr.bf16.mxu0 0
        %2067 = vmatpush2.bf16.msra.mxu0 0
        %2068 = vmatprep.subr.bf16.mxu0 0
        %2069 = vmatpush2.bf16.msra.mxu0 0
        %2070 = vmatprep.subr.bf16.mxu0 0
        %2071 = vmatpush2.bf16.msra.mxu0 0
        %2072 = vmatprep.subr.bf16.mxu0 0
        %2073 = vmatpush2.bf16.msra.mxu0 0
        %2074 = vmatprep.subr.bf16.mxu0 0
        %2075 = vmatpush2.bf16.msra.mxu0 0
        %2076 = vmatprep.mubr.bf16.mxu0 0
        %2077 = vmatmul.mubr.bf16.gmra.mxu0 %v1978
        %v2078 = vpop.f32.mrf.mxu0
        %v2079 = vadd.f32 0.0, %v2078
        %v2080 = vpop.f32.mrf.mxu0
        %v2081 = vpop.f32.mrf.mxu0
        %v2082 = vadd.f32 0.0, %v2081
        %v2083 = vpop.f32.mrf.mxu0
        %2084 = vmatprep.mubr.bf16.mxu0 0
        %2085 = vmatmul.mubr.bf16.gmra.mxu0 %v1975
        %v2086 = vpop.f32.mrf.mxu0
        %v2087 = vadd.f32 0.0, %v2086
        %v2088 = vpop.f32.mrf.mxu0
        %v2089 = vpop.f32.mrf.mxu0
        %v2090 = vpop.f32.mrf.mxu0
        %2091 = vdwg.mxu0
        %v2108 = vunpack.c.l.b16 %v1955
        %v2109 = vunpack.c.l.b16 %v1956
        %v2110 = vunpack.c.l.b16 %v1957
        %v2111 = vunpack.c.l.b16 %v1958
        %v2112 = vunpack.c.l.b16 %v1959
        %v2113 = vunpack.c.l.b16 %v1960
        %v2114 = vunpack.c.l.b16 %v1961
        %v2115 = vunpack.c.l.b16 %v1962
        %v2116 = vunpack.c.l.b16 %v1963
        %v2117 = vunpack.c.l.b16 %v1964
        %v2118 = vunpack.c.l.b16 %v1965
        %v2119 = vunpack.c.l.b16 %v1966
        %v2120 = vunpack.c.l.b16 %v1967
        %v2121 = vunpack.c.l.b16 %v1968
        %v2122 = vunpack.c.l.b16 %v1969
        %v2123 = vunpack.c.l.b16 %v1970
        %v2124 = vpack.c.b16 %v2109, %v2108
        %v2125 = vpack.c.b16 %v2111, %v2110
        %v2126 = vpack.c.b16 %v2113, %v2112
        %v2127 = vpack.c.b16 %v2115, %v2114
        %v2128 = vpack.c.b16 %v2117, %v2116
        %v2129 = vpack.c.b16 %v2119, %v2118
        %v2130 = vpack.c.b16 %v2121, %v2120
        %v2131 = vpack.c.b16 %v2123, %v2122
        %2140 = vmatprep.subr.bf16.mxu0 0
        %2141 = vmatpush1.bf16.msra.mxu0 %v2131
        %2142 = vmatprep.subr.bf16.mxu0 0
        %2143 = vmatpush1.bf16.msra.mxu0 %v2130
        %2144 = vmatprep.subr.bf16.mxu0 0
        %2145 = vmatpush1.bf16.msra.mxu0 %v2129
        %2146 = vmatprep.subr.bf16.mxu0 0
        %2147 = vmatpush1.bf16.msra.mxu0 %v2128
        %2148 = vmatprep.subr.bf16.mxu0 0
        %2149 = vmatpush1.bf16.msra.mxu0 %v2127
        %2150 = vmatprep.subr.bf16.mxu0 0
        %2151 = vmatpush1.bf16.msra.mxu0 %v2126
        %2152 = vmatprep.subr.bf16.mxu0 0
        %2153 = vmatpush1.bf16.msra.mxu0 %v2125
        %2154 = vmatprep.subr.bf16.mxu0 0
        %2155 = vmatpush1.bf16.msra.mxu0 %v2124
        %2156 = vmatprep.subr.bf16.mxu0 0
        %2157 = vmatpush2.bf16.msra.mxu0 0
        %2158 = vmatprep.subr.bf16.mxu0 0
        %2159 = vmatpush2.bf16.msra.mxu0 0
        %2160 = vmatprep.subr.bf16.mxu0 0
        %2161 = vmatpush2.bf16.msra.mxu0 0
        %2162 = vmatprep.subr.bf16.mxu0 0
        %2163 = vmatpush2.bf16.msra.mxu0 0
        %2164 = vmatprep.subr.bf16.mxu0 0
        %2165 = vmatpush2.bf16.msra.mxu0 0
        %2166 = vmatprep.subr.bf16.mxu0 0
        %2167 = vmatpush2.bf16.msra.mxu0 0
        %2168 = vmatprep.subr.bf16.mxu0 0
        %2169 = vmatpush2.bf16.msra.mxu0 0
        %2170 = vmatprep.subr.bf16.mxu0 0
        %2171 = vmatpush2.bf16.msra.mxu0 0
        %2172 = vmatprep.mubr.bf16.mxu0 0
        %2173 = vmatmul.mubr.bf16.gmra.mxu0 %v1953
        %v2174 = vpop.f32.mrf.mxu0
        %v2175 = vadd.f32 %v2079, %v2174
        %v2176 = vpop.f32.mrf.mxu0
        %v2177 = vpop.f32.mrf.mxu0
        %v2178 = vadd.f32 %v2082, %v2177
        %v2179 = vpop.f32.mrf.mxu0
        %2180 = vmatprep.mubr.bf16.mxu0 0
        %2181 = vmatmul.mubr.bf16.gmra.mxu0 %v1954
        %v2182 = vpop.f32.mrf.mxu0
        %v2183 = vadd.f32 %v2087, %v2182
        %v2184 = vpop.f32.mrf.mxu0
        %v2185 = vpop.f32.mrf.mxu0
        %v2186 = vpop.f32.mrf.mxu0
        %2187 = vdwg.mxu0
        %v2188 = vrot.slane %v1953, 7
        %v2189 = vrot.slane %v1954, 7
        %v2190 = vsel %vm683, %v2188, %v2189
        %v2193 = vsel %vm688, 0, %v2188
        %v2195 = vld [vmem:[%s11 + $0x40] sm:$0xf]
        %v2196 = vld [vmem:[%s11 + $0x44] sm:$0xf]
        %v2197 = vld [vmem:[%s11 + $0x48] sm:$0xf]
        %v2198 = vld [vmem:[%s11 + $0x4c] sm:$0xf]
        %v2199 = vld [vmem:[%s11 + $0x50] sm:$0xf]
        %v2200 = vld [vmem:[%s11 + $0x54] sm:$0xf]
        %v2201 = vld [vmem:[%s11 + $0x58] sm:$0xf]
        %v2202 = vld [vmem:[%s11 + $0x5c] sm:$0xf]
        %v2203 = vld [vmem:[%s11 + $0x60] sm:$0xf]
        %v2204 = vld [vmem:[%s11 + $0x64] sm:$0xf]
        %v2205 = vld [vmem:[%s11 + $0x68] sm:$0xf]
        %v2206 = vld [vmem:[%s11 + $0x6c] sm:$0xf]
        %v2207 = vld [vmem:[%s11 + $0x70] sm:$0xf]
        %v2208 = vld [vmem:[%s11 + $0x74] sm:$0xf]
        %v2209 = vld [vmem:[%s11 + $0x78] sm:$0xf]
        %v2210 = vld [vmem:[%s11 + $0x7c] sm:$0xf]
        %v2227 = vunpack.c.l.b16 %v2195
        %v2228 = vunpack.c.l.b16 %v2196
        %v2229 = vunpack.c.l.b16 %v2197
        %v2230 = vunpack.c.l.b16 %v2198
        %v2231 = vunpack.c.l.b16 %v2199
        %v2232 = vunpack.c.l.b16 %v2200
        %v2233 = vunpack.c.l.b16 %v2201
        %v2234 = vunpack.c.l.b16 %v2202
        %v2235 = vunpack.c.l.b16 %v2203
        %v2236 = vunpack.c.l.b16 %v2204
        %v2237 = vunpack.c.l.b16 %v2205
        %v2238 = vunpack.c.l.b16 %v2206
        %v2239 = vunpack.c.l.b16 %v2207
        %v2240 = vunpack.c.l.b16 %v2208
        %v2241 = vunpack.c.l.b16 %v2209
        %v2242 = vunpack.c.l.b16 %v2210
        %v2243 = vpack.c.b16 %v2228, %v2227
        %v2244 = vpack.c.b16 %v2230, %v2229
        %v2245 = vpack.c.b16 %v2232, %v2231
        %v2246 = vpack.c.b16 %v2234, %v2233
        %v2247 = vpack.c.b16 %v2236, %v2235
        %v2248 = vpack.c.b16 %v2238, %v2237
        %v2249 = vpack.c.b16 %v2240, %v2239
        %v2250 = vpack.c.b16 %v2242, %v2241
        %2259 = vmatprep.subr.bf16.mxu0 0
        %2260 = vmatpush1.bf16.msra.mxu0 %v2250
        %2261 = vmatprep.subr.bf16.mxu0 0
        %2262 = vmatpush1.bf16.msra.mxu0 %v2249
        %2263 = vmatprep.subr.bf16.mxu0 0
        %2264 = vmatpush1.bf16.msra.mxu0 %v2248
        %2265 = vmatprep.subr.bf16.mxu0 0
        %2266 = vmatpush1.bf16.msra.mxu0 %v2247
        %2267 = vmatprep.subr.bf16.mxu0 0
        %2268 = vmatpush1.bf16.msra.mxu0 %v2246
        %2269 = vmatprep.subr.bf16.mxu0 0
        %2270 = vmatpush1.bf16.msra.mxu0 %v2245
        %2271 = vmatprep.subr.bf16.mxu0 0
        %2272 = vmatpush1.bf16.msra.mxu0 %v2244
        %2273 = vmatprep.subr.bf16.mxu0 0
        %2274 = vmatpush1.bf16.msra.mxu0 %v2243
        %2275 = vmatprep.subr.bf16.mxu0 0
        %2276 = vmatpush2.bf16.msra.mxu0 0
        %2277 = vmatprep.subr.bf16.mxu0 0
        %2278 = vmatpush2.bf16.msra.mxu0 0
        %2279 = vmatprep.subr.bf16.mxu0 0
        %2280 = vmatpush2.bf16.msra.mxu0 0
        %2281 = vmatprep.subr.bf16.mxu0 0
        %2282 = vmatpush2.bf16.msra.mxu0 0
        %2283 = vmatprep.subr.bf16.mxu0 0
        %2284 = vmatpush2.bf16.msra.mxu0 0
        %2285 = vmatprep.subr.bf16.mxu0 0
        %2286 = vmatpush2.bf16.msra.mxu0 0
        %2287 = vmatprep.subr.bf16.mxu0 0
        %2288 = vmatpush2.bf16.msra.mxu0 0
        %2289 = vmatprep.subr.bf16.mxu0 0
        %2290 = vmatpush2.bf16.msra.mxu0 0
        %2291 = vmatprep.mubr.bf16.mxu0 0
        %2292 = vmatmul.mubr.bf16.gmra.mxu0 %v2193
        %v2293 = vpop.f32.mrf.mxu0
        %v2294 = vadd.f32 0.0, %v2293
        %v2295 = vpop.f32.mrf.mxu0
        %v2296 = vpop.f32.mrf.mxu0
        %v2297 = vadd.f32 0.0, %v2296
        %v2298 = vpop.f32.mrf.mxu0
        %2299 = vmatprep.mubr.bf16.mxu0 0
        %2300 = vmatmul.mubr.bf16.gmra.mxu0 %v2190
        %v2301 = vpop.f32.mrf.mxu0
        %v2302 = vadd.f32 0.0, %v2301
        %v2303 = vpop.f32.mrf.mxu0
        %v2304 = vpop.f32.mrf.mxu0
        %v2305 = vpop.f32.mrf.mxu0
        %2306 = vdwg.mxu0
        %v2307 = vadd.f32 %v2175, %v2294
        %v2308 = vadd.f32 %v2178, %v2297
        %v2309 = vadd.f32 %v2183, %v2302
        %v2310 = vld [vmem:[#allocation16] sm:$0x1]
        %v2312 = vlaneseq
        %v2313 = vshrl.u32 %v2312, 7
        %v2314 = vsub.s32 0, %v2313
        %v2315 = vrot.slane %v2310, %v2314
        %v2317 = vadd.f32 %v2307, %v2315
        %v2318 = vadd.f32 %v2308, %v2315
        %v2319 = vadd.f32 %v2309, %v2315
        %v2320 = vmax.f32 %v2317, 0.0
        %v2321 = vmax.f32 %v2318, 0.0
        %v2322 = vmax.f32 %v2319, 0.0
        %v2323 = vunpack.c.l.bf16 %v1578
        %v2324 = vunpack.c.h.bf16 %v1578
        %v2325 = vunpack.c.l.bf16 %v1579
        %v2326 = vadd.f32 %v2320, %v2323
        %v2327 = vadd.f32 %v2321, %v2324
        %v2328 = vadd.f32 %v2322, %v2325
        %v2329 = vmax.f32 %v2326, 0.0
        %v2330 = vmax.f32 %v2327, 0.0
        %v2331 = vmax.f32 %v2328, 0.0
        %v2332 = vmul.f32 %v2329, %v1054
        %v2333 = vmul.f32 %v2330, %v1059
        %v2334 = vmul.f32 %v2331, %v1064
        %v2335 = vld [vmem:[%s650] sm:$0xff]
        %v2336 = vld [vmem:[%s650 + $0x8] sm:$0xff]
        %v2337 = vld [vmem:[%s650 + $0x10] sm:$0xff]
        %2339 = vset.pattern.permute.xlu0 0
        %2340 = vperm.xlu0 %2339, %v2335
        %v2341 = vpop.permute.xlu0 %2340
        %2344 = vset.pattern.permute.xlu0 0
        %2345 = vperm.xlu0 %2344, %v2336
        %v2346 = vpop.permute.xlu0 %2345
        %2349 = vset.pattern.permute.xlu0 0
        %2350 = vperm.xlu0 %2349, %v2337
        %v2351 = vpop.permute.xlu0 %2350
        %v2353 = vmul.f32 %v2332, %v2341
        %v2354 = vmul.f32 %v2333, %v2346
        %v2355 = vmul.f32 %v2334, %v2351
        %v2356 = vadd.f32 %v2353, %v2354
        %v2357 = vadd.f32 %v2356, %v2355
        %v2358 = vrot.slane %v2357, 4
        %v2359 = vadd.f32 %v2357, %v2358
        %v2360 = vrot.slane %v2359, 2
        %v2361 = vadd.f32 %v2359, %v2360
        %v2362 = vrot.slane %v2361, 1
        %v2363 = vadd.f32 %v2361, %v2362
        %v2364 = vpack.c.bf16 %v2363, %v2363
        %v2365 = vld [vmem:[#allocation17] sm:$0xf]
        %v2366 = vld [vmem:[#allocation17 + $0x4] sm:$0xf]
        %v2367 = vld [vmem:[#allocation17 + $0x8] sm:$0xf]
        %v2368 = vld [vmem:[#allocation17 + $0xc] sm:$0xf]
        %v2369 = vld [vmem:[#allocation17 + $0x10] sm:$0xf]
        %v2370 = vld [vmem:[#allocation17 + $0x14] sm:$0xf]
        %v2371 = vld [vmem:[#allocation17 + $0x18] sm:$0xf]
        %v2372 = vld [vmem:[#allocation17 + $0x1c] sm:$0xf]
        %v2373 = vld [vmem:[#allocation17 + $0x20] sm:$0xf]
        %v2374 = vld [vmem:[#allocation17 + $0x24] sm:$0xf]
        %v2375 = vld [vmem:[#allocation17 + $0x28] sm:$0xf]
        %v2376 = vld [vmem:[#allocation17 + $0x2c] sm:$0xf]
        %v2377 = vld [vmem:[#allocation17 + $0x30] sm:$0xf]
        %v2378 = vld [vmem:[#allocation17 + $0x34] sm:$0xf]
        %v2379 = vld [vmem:[#allocation17 + $0x38] sm:$0xf]
        %v2380 = vld [vmem:[#allocation17 + $0x3c] sm:$0xf]
        %v2381 = vld [vmem:[%s14] sm:$0x1]
        %v2398 = vunpack.c.l.b16 %v2365
        %v2399 = vunpack.c.l.b16 %v2366
        %v2400 = vunpack.c.l.b16 %v2367
        %v2401 = vunpack.c.l.b16 %v2368
        %v2402 = vunpack.c.l.b16 %v2369
        %v2403 = vunpack.c.l.b16 %v2370
        %v2404 = vunpack.c.l.b16 %v2371
        %v2405 = vunpack.c.l.b16 %v2372
        %v2406 = vunpack.c.l.b16 %v2373
        %v2407 = vunpack.c.l.b16 %v2374
        %v2408 = vunpack.c.l.b16 %v2375
        %v2409 = vunpack.c.l.b16 %v2376
        %v2410 = vunpack.c.l.b16 %v2377
        %v2411 = vunpack.c.l.b16 %v2378
        %v2412 = vunpack.c.l.b16 %v2379
        %v2413 = vunpack.c.l.b16 %v2380
        %v2414 = vpack.c.b16 %v2399, %v2398
        %v2415 = vpack.c.b16 %v2401, %v2400
        %v2416 = vpack.c.b16 %v2403, %v2402
        %v2417 = vpack.c.b16 %v2405, %v2404
        %v2418 = vpack.c.b16 %v2407, %v2406
        %v2419 = vpack.c.b16 %v2409, %v2408
        %v2420 = vpack.c.b16 %v2411, %v2410
        %v2421 = vpack.c.b16 %v2413, %v2412
        %2430 = vmatprep.subr.bf16.mxu0 0
        %2431 = vmatpush1.bf16.msra.mxu0 %v2421
        %2432 = vmatprep.subr.bf16.mxu0 0
        %2433 = vmatpush1.bf16.msra.mxu0 %v2420
        %2434 = vmatprep.subr.bf16.mxu0 0
        %2435 = vmatpush1.bf16.msra.mxu0 %v2419
        %2436 = vmatprep.subr.bf16.mxu0 0
        %2437 = vmatpush1.bf16.msra.mxu0 %v2418
        %2438 = vmatprep.subr.bf16.mxu0 0
        %2439 = vmatpush1.bf16.msra.mxu0 %v2417
        %2440 = vmatprep.subr.bf16.mxu0 0
        %2441 = vmatpush1.bf16.msra.mxu0 %v2416
        %2442 = vmatprep.subr.bf16.mxu0 0
        %2443 = vmatpush1.bf16.msra.mxu0 %v2415
        %2444 = vmatprep.subr.bf16.mxu0 0
        %2445 = vmatpush1.bf16.msra.mxu0 %v2414
        %2446 = vmatprep.subr.bf16.mxu0 0
        %2447 = vmatpush2.bf16.msra.mxu0 0
        %2448 = vmatprep.subr.bf16.mxu0 0
        %2449 = vmatpush2.bf16.msra.mxu0 0
        %2450 = vmatprep.subr.bf16.mxu0 0
        %2451 = vmatpush2.bf16.msra.mxu0 0
        %2452 = vmatprep.subr.bf16.mxu0 0
        %2453 = vmatpush2.bf16.msra.mxu0 0
        %2454 = vmatprep.subr.bf16.mxu0 0
        %2455 = vmatpush2.bf16.msra.mxu0 0
        %2456 = vmatprep.subr.bf16.mxu0 0
        %2457 = vmatpush2.bf16.msra.mxu0 0
        %2458 = vmatprep.subr.bf16.mxu0 0
        %2459 = vmatpush2.bf16.msra.mxu0 0
        %2460 = vmatprep.subr.bf16.mxu0 0
        %2461 = vmatpush2.bf16.msra.mxu0 0
        %2462 = vmatprep.mubr.bf16.mxu0 0
        %2463 = vmatmul.mubr.bf16.gmra.mxu0 %v2364
        %v2464 = vpop.f32.mrf.mxu0
        %v2465 = vadd.f32 %v2381, %v2464
        %v2466 = vpop.f32.mrf.mxu0
        %v2467 = vpop.f32.mrf.mxu0
        %v2468 = vpop.f32.mrf.mxu0
        %2469 = vdwg.mxu0
        %2470 = vst [vmem:[%s639] sm:$0x1] %v2465
        %s2471 = sand.u32 %s368, 1
        %s2472 = scalar_lea.sflag [#allocation4], %s2471
        %s2473 = sand.u32 %s368, 1
        %s2474 = scalar_lea.vmem [#allocation19], %s2473
        // Predicated region
        $region121: #{tcn_forward.1} parent=79 // pred_check
          %p2475 = pneg %p378
        $region122: #{tcn_forward.1} parent=79 // pred_check_branch
          %2477 = sbr.rel (%p2475) target = $region124
        $region123: #{tcn_forward.1} parent=79 // pred_region
          %s2479 = ssub.s32 16, 16
          %2480 = vsyncadd %s2472, %s2479
          %s2481 = smul.addr %s35, 16
          %s2482 = scalar_lea.hbm %s15, %s2481
          %s2484 = sshll.u32 %s2474, 4
          %s2485 = int_to_ptr.vmem [resolvable:$true] %s2484
          %2487 = dma.vmem_to_hbm [thread:$0]  %s2485, 16, %s2482, %s2472
        $region124: #{tcn_forward.1} parent=79 // pred_fallthru
          _
      $region80: #{tcn_forward.1} parent=5 // pred_fallthru
        _
      %p2488 = scmp.le.s32.totalorder 2, %s30
      // Predicated region
      $region125: #{tcn_forward.1} parent=5 // pred_check
        %p2489 = pneg %p2488
      $region126: #{tcn_forward.1} parent=5 // pred_check_branch
        %2491 = sbr.rel (%p2489) target = $region128
      $region127: #{tcn_forward.1} parent=5 // pred_region
        %s2492 = ssub.s32 %s30, 2
        // Predicated region
        $region129: #{tcn_forward.1} parent=127 // pred_check
          %p2493 = pneg %p384
        $region130: #{tcn_forward.1} parent=127 // pred_check_branch
          %2495 = sbr.rel (%p2493) target = $region132
        $region131: #{tcn_forward.1} parent=127 // pred_region
          %s2496 = sand.u32 %s369, 1
          %s2497 = scalar_lea.sflag [#allocation4], %s2496
          %s2498 = sand.u32 %s369, 1
          %s2499 = scalar_lea.vmem [#allocation19], %s2498
          %2500 = dma.done %s2497, 16
        $region132: #{tcn_forward.1} parent=127 // pred_fallthru
          _
      $region128: #{tcn_forward.1} parent=5 // pred_fallthru
        _
    $region6: #{tcn_forward.1} parent=1 // loop_footer
      %s34 = sadd.s32 1, %s30
    $region7: #{tcn_forward.1} parent=1 // loop_footer_branch
      %29 = sbr.rel target = $region3
    $region8: #{tcn_forward.1} parent=1 // loop_exit
      _
    %2501 = vsyncpa [#allocation3], 1
    %s2502 = scalar_lea.sflag [#allocation3], 1
    %2503 = vsyncpa %s2502, 1
    %2504 = vsyncpa [#allocation6], 1
    %2505 = vsyncpa [#allocation9], 1
    %2506 = vsyncpa [#allocation12], 1
    %2507 = vsyncpa [#allocation15], 1
    %2508 = vsyncpa [#allocation18], 1
    %2509 = vsyncpa [#allocation4], 1
    %s2510 = scalar_lea.sflag [#allocation4], 1
    %2511 = vsyncpa %s2510, 1

</llo_original>
